<compile_context>
chip_gen: v7x
topology: tpu7x:2x2x1
jax: 0.10.0
libtpu: 0.0.40
codegen_flags: <defaults>
</compile_context>

<pallas_src>
import functools

import jax
import jax.numpy as jnp
from jax.experimental import pallas as pl
from jax.experimental.pallas import tpu as pltpu


# ----------------------------- in-kernel helpers -----------------------------

def _layer_norm(x, gamma, beta, eps=1e-5):
    # PyTorch nn.LayerNorm: biased variance, eps inside sqrt.
    mu = jnp.mean(x, axis=-1, keepdims=True)
    var = jnp.mean((x - mu) ** 2, axis=-1, keepdims=True)
    return (x - mu) * jax.lax.rsqrt(var + eps) * gamma + beta


def _gelu_exact(x):
    # PyTorch nn.GELU default = exact erf formulation.
    return 0.5 * x * (1.0 + jax.lax.erf(x * (2.0 ** -0.5)))


def _softmax_last(x):
    m = jnp.max(x, axis=-1, keepdims=True)
    e = jnp.exp(x - m)
    s = jnp.sum(e, axis=-1, keepdims=True)
    return e * pl.reciprocal(s, approx=True)


# --------------------------------- kernel ------------------------------------

def vit_fused_kernel(nheads, dim_head, n_valid,
                     patches_ref, w_emb_ref, b_emb_ref, cls_ref, pos_ref,
                     ln1_g_ref, ln1_b_ref, wqkv_ref, wo_ref, bo_ref,
                     ln2_g_ref, ln2_b_ref, w1_ref, b1_ref, w2_ref, b2_ref,
                     out_ref, x_ref):
    layer = pl.program_id(1)
    H, dh = nheads, dim_head
    dimD = H * dh
    B, Np, D = x_ref.shape          # (batch block, padded tokens, model dim)
    nP = n_valid - 1                # real patch tokens (cls is token 0)

    # ---- patch embedding + cls token + positional embedding (layer 0 only) --
    @pl.when(layer == 0)
    def _():
        # One lane-dense matmul over the whole batch block: (B*nP, dp)x(dp, D)
        emb = jnp.dot(patches_ref[...], w_emb_ref[...],
                      preferred_element_type=jnp.float32) + b_emb_ref[...]
        cls_row = (cls_ref[...] + pos_ref[0:1, :])[None]          # (1, 1, D)
        pos_patch = pos_ref[1:n_valid, :]                         # (nP, D)
        for b in range(B):                                        # static unroll
            x_ref[b:b + 1, 0:1, :] = cls_row
            x_ref[b:b + 1, 1:n_valid, :] = (
                emb[b * nP:(b + 1) * nP, :] + pos_patch)[None]
            if Np > n_valid:                                      # zero padding rows
                x_ref[b:b + 1, n_valid:Np, :] = jnp.zeros(
                    (1, Np - n_valid, D), jnp.float32)

    x = x_ref[...].reshape(B * Np, D)                             # f32 residual stream

    # ---- attention block: LN -> fused QKV -> per-head SDPA -> proj -> res ---
    xn = _layer_norm(x, ln1_g_ref[0], ln1_b_ref[0])
    # Single MXU-wide projection: (B*Np, D) x (D, 3*H*dh).
    qkv = jnp.dot(xn.astype(jnp.bfloat16), wqkv_ref[0],
                  preferred_element_type=jnp.float32)             # (B*Np, 3*dimD)
    qkv = qkv.reshape(B, Np, 3 * dimD)

    if Np > n_valid:
        col = jax.lax.broadcasted_iota(jnp.int32, (1, 1, Np), 2)
        kmask = jnp.where(col < n_valid, 0.0, -1e30).astype(jnp.float32)
    else:
        kmask = None

    ctx_heads = []
    for h in range(H):                                            # static unroll
        qh = qkv[:, :, h * dh:(h + 1) * dh]                       # (B, Np, dh)
        kh = qkv[:, :, dimD + h * dh:dimD + (h + 1) * dh]
        vh = qkv[:, :, 2 * dimD + h * dh:2 * dimD + (h + 1) * dh]
        # 1/sqrt(dim_head) already folded into the Q weights at init.
        s = jnp.einsum("bqd,bkd->bqk", qh, kh,
                       preferred_element_type=jnp.float32)        # (B, Np, Np)
        if kmask is not None:
            s = s + kmask
        w = _softmax_last(s)
        ctx_heads.append(jnp.einsum("bqk,bkd->bqd", w, vh,
                                    preferred_element_type=jnp.float32))
    ctx = jnp.concatenate(ctx_heads, axis=-1)                     # (B, Np, dimD)
    ctx = ctx.reshape(B * Np, dimD).astype(jnp.bfloat16)
    # Head reduction fused into one MXU contraction: K = H*dh.
    attn = jnp.dot(ctx, wo_ref[0],
                   preferred_element_type=jnp.float32) + bo_ref[0]
    x1 = x + attn

    # ---- FFN block: LN -> Linear -> GELU -> Linear -> residual --------------
    xn2 = _layer_norm(x1, ln2_g_ref[0], ln2_b_ref[0])
    h1 = jnp.dot(xn2.astype(jnp.bfloat16), w1_ref[0],
                 preferred_element_type=jnp.float32) + b1_ref[0]
    h1 = _gelu_exact(h1)
    y = jnp.dot(h1.astype(jnp.bfloat16), w2_ref[0],
                preferred_element_type=jnp.float32) + b2_ref[0]
    x2 = x1 + y

    x3 = x2.reshape(B, Np, D)
    x_ref[...] = x3                       # activation stays resident in VMEM

    @pl.when(layer == pl.num_programs(1) - 1)
    def _():
        out_ref[...] = x3[:, 0:1, :]      # cls pooling, written once per block


# --------------------------------- wrapper ------------------------------------

def vit_forward(img, params, *, patch_size, nheads, dim_head, block_batch=None):
    bs, c, IH, IW = img.shape
    PH, PW = patch_size
    nP = (IH // PH) * (IW // PW)
    dim_patch = c * PH * PW
    D = params["pos"].shape[-1]
    n_valid = nP + 1
    N_pad = ((n_valid + 7) // 8) * 8          # pad token count to sublane multiple
    depth = params["wqkv"].shape[0]
    hidden = params["w1"].shape[-1]
    dimD = nheads * dim_head

    if block_batch is None:
        block_batch = 1
        for cand in range(min(bs, 8), 0, -1):  # largest divisor of bs (<= 8)
            if bs % cand == 0:
                block_batch = cand
                break
    assert bs % block_batch == 0
    B_blk = block_batch
    # Note: for v7x megacore keep bs // B_blk >= 2 so both TensorCores are used.

    # glue: patchify (matches torch reshape/permute exactly), bf16 host-side
    patches = img.reshape(bs, c, IH // PH, PH, IW // PW, PW)
    patches = patches.transpose(0, 2, 4, 3, 5, 1).reshape(bs * nP, dim_patch)
    patches = patches.astype(jnp.bfloat16)

    # pad positional embedding to N_pad rows (padded rows unused)
    pos = params["pos"]
    if N_pad > n_valid:
        pos = jnp.concatenate(
            [pos, jnp.zeros((N_pad - n_valid, D), pos.dtype)], axis=0)

    # explicit scoped-VMEM budget, capped below physical capacity
    try:
        vmem_cap = pltpu.get_tpu_info().vmem_capacity_bytes
    except Exception:
        vmem_cap = 64 * 1024 * 1024
    vmem_limit = int(max(32 * 1024 * 1024,
                         min(100 * 1024 * 1024, vmem_cap - 8 * 1024 * 1024)))

    kernel = functools.partial(vit_fused_kernel, nheads, dim_head, n_valid)

    out = pl.pallas_call(
        kernel,
        out_shape=jax.ShapeDtypeStruct((bs, 1, D), jnp.float32),
        grid=(bs // B_blk, depth),
        in_specs=[
            pl.BlockSpec((B_blk * nP, dim_patch), lambda b, d: (b, 0)),   # patches
            pl.BlockSpec((dim_patch, D), lambda b, d: (0, 0)),            # w_emb
            pl.BlockSpec((1, D), lambda b, d: (0, 0)),                    # b_emb
            pl.BlockSpec((1, D), lambda b, d: (0, 0)),                    # cls
            pl.BlockSpec((N_pad, D), lambda b, d: (0, 0)),                # pos
            pl.BlockSpec((1, 1, D), lambda b, d: (d, 0, 0)),              # ln1_g
            pl.BlockSpec((1, 1, D), lambda b, d: (d, 0, 0)),              # ln1_b
            pl.BlockSpec((1, D, 3 * dimD), lambda b, d: (d, 0, 0)),       # wqkv
            pl.BlockSpec((1, dimD, D), lambda b, d: (d, 0, 0)),           # wo
            pl.BlockSpec((1, 1, D), lambda b, d: (d, 0, 0)),              # bo
            pl.BlockSpec((1, 1, D), lambda b, d: (d, 0, 0)),              # ln2_g
            pl.BlockSpec((1, 1, D), lambda b, d: (d, 0, 0)),              # ln2_b
            pl.BlockSpec((1, D, hidden), lambda b, d: (d, 0, 0)),         # w1
            pl.BlockSpec((1, 1, hidden), lambda b, d: (d, 0, 0)),         # b1
            pl.BlockSpec((1, hidden, D), lambda b, d: (d, 0, 0)),         # w2
            pl.BlockSpec((1, 1, D), lambda b, d: (d, 0, 0)),              # b2
        ],
        out_specs=pl.BlockSpec((B_blk, 1, D), lambda b, d: (b, 0, 0)),
        scratch_shapes=[pltpu.VMEM((B_blk, N_pad, D), jnp.float32)],
        compiler_params=pltpu.CompilerParams(
            dimension_semantics=("parallel", "arbitrary"),
            vmem_limit_bytes=vmem_limit),
    )(patches,
      params["w_emb"], params["b_emb"], params["cls"], pos,
      params["ln1_g"], params["ln1_b"], params["wqkv"], params["wo"],
      params["bo"], params["ln2_g"], params["ln2_b"],
      params["w1"], params["b1"], params["w2"], params["b2"])

    # pool == 'cls'  (score=False -> head is Identity)
    return out[:, 0, :]


# ------------------------------ parameter init --------------------------------

def init_vit_params(key, *, dim_patch, dim, depth, hidden_dim, nheads,
                    dim_head, n_patches):
    dimD = nheads * dim_head
    z = dim_head ** (-0.5)
    keys = jax.random.split(key, 3 + depth)

    wqkv_l, wo_l, w1_l, w2_l = [], [], [], []
    for d in range(depth):
        ks = jax.random.split(keys[3 + d], 6)
        # NOTE: 1/sqrt(dim_head) attention scale folded into Q weights here.
        wq = 0.02 * jax.random.normal(ks[0], (dim, dimD), jnp.float32) * z
        wk = 0.02 * jax.random.normal(ks[1], (dim, dimD), jnp.float32)
        wv = 0.02 * jax.random.normal(ks[2], (dim, dimD), jnp.float32)
        wqkv_l.append(jnp.concatenate([wq, wk, wv], axis=1))       # (dim, 3*dimD)
        wo_l.append(0.02 * jax.random.normal(ks[3], (dimD, dim), jnp.float32))
        w1_l.append(0.02 * jax.random.normal(ks[4], (dim, hidden_dim), jnp.float32))
        w2_l.append(0.02 * jax.random.normal(ks[5], (hidden_dim, dim), jnp.float32))

    bf16 = jnp.bfloat16
    params = {
        "w_emb": (0.02 * jax.random.normal(keys[0], (dim_patch, dim),
                                           jnp.float32)).astype(bf16),
        "b_emb": jnp.zeros((1, dim), jnp.float32),
        "cls":   jax.random.normal(keys[1], (1, dim), jnp.float32),
        "pos":   jax.random.normal(keys[2], (n_patches + 1, dim), jnp.float32),
        "ln1_g": jnp.ones((depth, 1, dim), jnp.float32),
        "ln1_b": jnp.zeros((depth, 1, dim), jnp.float32),
        "wqkv":  jnp.stack(wqkv_l).astype(bf16),     # (depth, dim, 3*dimD) lane-dense
        "wo":    jnp.stack(wo_l).astype(bf16),       # (depth, dimD, dim)   lane-dense
        "bo":    jnp.zeros((depth, 1, dim), jnp.float32),
        "ln2_g": jnp.ones((depth, 1, dim), jnp.float32),
        "ln2_b": jnp.zeros((depth, 1, dim), jnp.float32),
        "w1":    jnp.stack(w1_l).astype(bf16),       # (depth, dim, hidden)
        "b1":    jnp.zeros((depth, 1, hidden_dim), jnp.float32),
        "w2":    jnp.stack(w2_l).astype(bf16),       # (depth, hidden, dim)
        "b2":    jnp.zeros((depth, 1, dim), jnp.float32),
    }
    return params


# ----------------------------------- main --------------------------------------

if __name__ == "__main__":
    # Small Vit config: image 16x16, patch 8x8, channels 3 -> 4 patches,
    # dim=32, depth=2, hidden_dim=64, nheads=2, dim_head=8.
    batch = 2
    channels = 3
    image_size = (16, 16)
    patch_size = (8, 8)
    dim = 32
    depth = 2
    hidden_dim = 64
    nheads = 2
    dim_head = 8

    IH, IW = image_size
    PH, PW = patch_size
    n_patches = (IH // PH) * (IW // PW)
    dim_patch = channels * PH * PW

    root = jax.random.PRNGKey(0)
    k_img, k_par = jax.random.split(root)
    img = jax.random.uniform(k_img, (batch, channels, IH, IW), jnp.float32)

    params = init_vit_params(k_par, dim_patch=dim_patch, dim=dim, depth=depth,
                             hidden_dim=hidden_dim, nheads=nheads,
                             dim_head=dim_head, n_patches=n_patches)

    out = vit_forward(img, params, patch_size=patch_size,
                      nheads=nheads, dim_head=dim_head, block_batch=batch)
    out = jax.block_until_ready(out)
    assert out.shape == (batch, dim), out.shape
    assert bool(jnp.all(jnp.isfinite(out))), "non-finite output"
    print("KERNEL_OK")
</pallas_src>

<mosaic_0001>
module attributes {stable_mosaic.version = 11 : i64} {
  func.func @vit_fused_kernel(%arg0: i32, %arg1: i32, %arg2: memref<8x192xbf16, #tpu.memory_space<vmem>>, %arg3: memref<192x32xbf16, #tpu.memory_space<vmem>>, %arg4: memref<1x32xf32, #tpu.memory_space<vmem>>, %arg5: memref<1x32xf32, #tpu.memory_space<vmem>>, %arg6: memref<8x32xf32, #tpu.memory_space<vmem>>, %arg7: memref<1x1x32xf32, #tpu.memory_space<vmem>>, %arg8: memref<1x1x32xf32, #tpu.memory_space<vmem>>, %arg9: memref<1x32x48xbf16, #tpu.memory_space<vmem>>, %arg10: memref<1x16x32xbf16, #tpu.memory_space<vmem>>, %arg11: memref<1x1x32xf32, #tpu.memory_space<vmem>>, %arg12: memref<1x1x32xf32, #tpu.memory_space<vmem>>, %arg13: memref<1x1x32xf32, #tpu.memory_space<vmem>>, %arg14: memref<1x32x64xbf16, #tpu.memory_space<vmem>>, %arg15: memref<1x1x64xf32, #tpu.memory_space<vmem>>, %arg16: memref<1x64x32xbf16, #tpu.memory_space<vmem>>, %arg17: memref<1x1x32xf32, #tpu.memory_space<vmem>>, %arg18: memref<2x1x32xf32, #tpu.memory_space<vmem>>, %arg19: memref<2x8x32xf32, #tpu.memory_space<vmem>>) attributes {dimension_semantics = [#tpu.dimension_semantics<parallel>, #tpu.dimension_semantics<arbitrary>], iteration_bounds = array<i64: 1, 2>, scalar_prefetch = 0 : i64, scratch_operands = 1 : i64, tpu.core_type = #tpu.core_type<tc>, window_params = [{transform_indices = @transform_0, window_bounds = array<i64: 8, 192>}, {pipeline_mode = #tpu.pipeline_mode<synchronous>, transform_indices = @transform_1, window_bounds = array<i64: 192, 32>}, {pipeline_mode = #tpu.pipeline_mode<synchronous>, transform_indices = @transform_2, window_bounds = array<i64: 1, 32>}, {pipeline_mode = #tpu.pipeline_mode<synchronous>, transform_indices = @transform_3, window_bounds = array<i64: 1, 32>}, {pipeline_mode = #tpu.pipeline_mode<synchronous>, transform_indices = @transform_4, window_bounds = array<i64: 8, 32>}, {transform_indices = @transform_5, window_bounds = array<i64: 1, 1, 32>}, {transform_indices = @transform_6, window_bounds = array<i64: 1, 1, 32>}, {transform_indices = @transform_7, window_bounds = array<i64: 1, 32, 48>}, {transform_indices = @transform_8, window_bounds = array<i64: 1, 16, 32>}, {transform_indices = @transform_9, window_bounds = array<i64: 1, 1, 32>}, {transform_indices = @transform_10, window_bounds = array<i64: 1, 1, 32>}, {transform_indices = @transform_11, window_bounds = array<i64: 1, 1, 32>}, {transform_indices = @transform_12, window_bounds = array<i64: 1, 32, 64>}, {transform_indices = @transform_13, window_bounds = array<i64: 1, 1, 64>}, {transform_indices = @transform_14, window_bounds = array<i64: 1, 64, 32>}, {transform_indices = @transform_15, window_bounds = array<i64: 1, 1, 32>}, {transform_indices = @transform_16, window_bounds = array<i64: 2, 1, 32>}]} {
    %c0_i32 = arith.constant 0 : i32
    %0 = arith.cmpi eq, %arg1, %c0_i32 : i32
    %1 = arith.extui %0 : i1 to i32
    %c0_i32_0 = arith.constant 0 : i32
    %2 = arith.cmpi ne, %1, %c0_i32_0 : i32
    scf.if %2 {
      %c0_66 = arith.constant 0 : index
      %c0_67 = arith.constant 0 : index
      %143 = vector.load %arg2[%c0_66, %c0_67] : memref<8x192xbf16, #tpu.memory_space<vmem>>, vector<8x192xbf16>
      %c0_68 = arith.constant 0 : index
      %c0_69 = arith.constant 0 : index
      %144 = vector.load %arg3[%c0_68, %c0_69] : memref<192x32xbf16, #tpu.memory_space<vmem>>, vector<192x32xbf16>
      %cst_70 = arith.constant dense<0.000000e+00> : vector<8x32xf32>
      %145 = tpu.matmul %143, %144, %cst_70 {dimension_numbers = #tpu.dot_dimension_numbers<[1], [0], [0], [1], [0, 0, 1, 1], [], []>} : vector<8x192xbf16>, vector<192x32xbf16>, vector<8x32xf32> -> vector<8x32xf32>
      %c0_71 = arith.constant 0 : index
      %c0_72 = arith.constant 0 : index
      %146 = vector.load %arg4[%c0_71, %c0_72] : memref<1x32xf32, #tpu.memory_space<vmem>>, vector<1x32xf32>
      %147 = vector.broadcast %146 : vector<1x32xf32> to vector<8x32xf32>
      %148 = arith.addf %145, %147 : vector<8x32xf32>
      %c0_73 = arith.constant 0 : index
      %c0_74 = arith.constant 0 : index
      %149 = vector.load %arg5[%c0_73, %c0_74] : memref<1x32xf32, #tpu.memory_space<vmem>>, vector<1x32xf32>
      %c0_75 = arith.constant 0 : index
      %c0_76 = arith.constant 0 : index
      %150 = vector.load %arg6[%c0_75, %c0_76] : memref<8x32xf32, #tpu.memory_space<vmem>>, vector<1x32xf32>
      %151 = arith.addf %149, %150 : vector<1x32xf32>
      %152 = vector.shape_cast %151 : vector<1x32xf32> to vector<1x1x32xf32>
      %c1 = arith.constant 1 : index
      %c0_77 = arith.constant 0 : index
      %153 = vector.load %arg6[%c1, %c0_77] : memref<8x32xf32, #tpu.memory_space<vmem>>, vector<4x32xf32>
      %c0_78 = arith.constant 0 : index
      %c0_79 = arith.constant 0 : index
      %c0_80 = arith.constant 0 : index
      %154 = vector.load %arg19[%c0_78, %c0_79, %c0_80] : memref<2x8x32xf32, #tpu.memory_space<vmem>>, vector<1x1x32xf32>
      tpu.vector_store %arg19[%c0_78, %c0_79, %c0_80], %152 {strides = array<i32>} : memref<2x8x32xf32, #tpu.memory_space<vmem>>, vector<1x1x32xf32>,
      %155 = vector.extract_strided_slice %148 {offsets = [0, 0], sizes = [4, 32], strides = [1, 1]} : vector<8x32xf32> to vector<4x32xf32>
      %156 = arith.addf %155, %153 : vector<4x32xf32>
      %157 = vector.shape_cast %156 : vector<4x32xf32> to vector<1x4x32xf32>
      %c0_81 = arith.constant 0 : index
      %c1_82 = arith.constant 1 : index
      %c0_83 = arith.constant 0 : index
      %158 = vector.load %arg19[%c0_81, %c1_82, %c0_83] : memref<2x8x32xf32, #tpu.memory_space<vmem>>, vector<1x4x32xf32>
      tpu.vector_store %arg19[%c0_81, %c1_82, %c0_83], %157 {strides = array<i32>} : memref<2x8x32xf32, #tpu.memory_space<vmem>>, vector<1x4x32xf32>,
      %cst_84 = arith.constant 0.000000e+00 : f32
      %159 = vector.broadcast %cst_84 : f32 to vector<1x3x32xf32>
      %c0_85 = arith.constant 0 : index
      %c5 = arith.constant 5 : index
      %c0_86 = arith.constant 0 : index
      %160 = vector.load %arg19[%c0_85, %c5, %c0_86] : memref<2x8x32xf32, #tpu.memory_space<vmem>>, vector<1x3x32xf32>
      tpu.vector_store %arg19[%c0_85, %c5, %c0_86], %159 {strides = array<i32>} : memref<2x8x32xf32, #tpu.memory_space<vmem>>, vector<1x3x32xf32>,
      %c1_87 = arith.constant 1 : index
      %c0_88 = arith.constant 0 : index
      %c0_89 = arith.constant 0 : index
      %161 = vector.load %arg19[%c1_87, %c0_88, %c0_89] : memref<2x8x32xf32, #tpu.memory_space<vmem>>, vector<1x1x32xf32>
      tpu.vector_store %arg19[%c1_87, %c0_88, %c0_89], %152 {strides = array<i32>} : memref<2x8x32xf32, #tpu.memory_space<vmem>>, vector<1x1x32xf32>,
      %162 = vector.extract_strided_slice %148 {offsets = [4, 0], sizes = [4, 32], strides = [1, 1]} : vector<8x32xf32> to vector<4x32xf32>
      %163 = arith.addf %162, %153 : vector<4x32xf32>
      %164 = vector.shape_cast %163 : vector<4x32xf32> to vector<1x4x32xf32>
      %c1_90 = arith.constant 1 : index
      %c1_91 = arith.constant 1 : index
      %c0_92 = arith.constant 0 : index
      %165 = vector.load %arg19[%c1_90, %c1_91, %c0_92] : memref<2x8x32xf32, #tpu.memory_space<vmem>>, vector<1x4x32xf32>
      tpu.vector_store %arg19[%c1_90, %c1_91, %c0_92], %164 {strides = array<i32>} : memref<2x8x32xf32, #tpu.memory_space<vmem>>, vector<1x4x32xf32>,
      %cst_93 = arith.constant 0.000000e+00 : f32
      %166 = vector.broadcast %cst_93 : f32 to vector<1x3x32xf32>
      %c1_94 = arith.constant 1 : index
      %c5_95 = arith.constant 5 : index
      %c0_96 = arith.constant 0 : index
      %167 = vector.load %arg19[%c1_94, %c5_95, %c0_96] : memref<2x8x32xf32, #tpu.memory_space<vmem>>, vector<1x3x32xf32>
      tpu.vector_store %arg19[%c1_94, %c5_95, %c0_96], %166 {strides = array<i32>} : memref<2x8x32xf32, #tpu.memory_space<vmem>>, vector<1x3x32xf32>,
    } else {
    }
    %c0 = arith.constant 0 : index
    %c0_1 = arith.constant 0 : index
    %c0_2 = arith.constant 0 : index
    %3 = vector.load %arg19[%c0, %c0_1, %c0_2] : memref<2x8x32xf32, #tpu.memory_space<vmem>>, vector<2x8x32xf32>
    %4 = vector.shape_cast %3 : vector<2x8x32xf32> to vector<16x32xf32>
    %c0_3 = arith.constant 0 : index
    %c0_4 = arith.constant 0 : index
    %c0_5 = arith.constant 0 : index
    %5 = vector.load %arg7[%c0_3, %c0_4, %c0_5] : memref<1x1x32xf32, #tpu.memory_space<vmem>>, vector<1x1x32xf32>
    %6 = vector.shape_cast %5 : vector<1x1x32xf32> to vector<1x32xf32>
    %c0_6 = arith.constant 0 : index
    %c0_7 = arith.constant 0 : index
    %c0_8 = arith.constant 0 : index
    %7 = vector.load %arg8[%c0_6, %c0_7, %c0_8] : memref<1x1x32xf32, #tpu.memory_space<vmem>>, vector<1x1x32xf32>
    %8 = vector.shape_cast %7 : vector<1x1x32xf32> to vector<1x32xf32>
    %cst = arith.constant dense<0.000000e+00> : vector<16xf32>
    %9 = vector.multi_reduction <add>, %4, %cst [1] : vector<16x32xf32> to vector<16xf32>
    %10 = vector.shape_cast %9 : vector<16xf32> to vector<16x1xf32>
    %cst_9 = arith.constant 3.200000e+01 : f32
    %11 = vector.broadcast %cst_9 : f32 to vector<16x1xf32>
    %12 = arith.divf %10, %11 : vector<16x1xf32>
    %13 = vector.broadcast %12 : vector<16x1xf32> to vector<16x32xf32>
    %14 = arith.subf %4, %13 : vector<16x32xf32>
    %15 = arith.mulf %14, %14 : vector<16x32xf32>
    %cst_10 = arith.constant dense<0.000000e+00> : vector<16xf32>
    %16 = vector.multi_reduction <add>, %15, %cst_10 [1] : vector<16x32xf32> to vector<16xf32>
    %17 = vector.shape_cast %16 : vector<16xf32> to vector<16x1xf32>
    %cst_11 = arith.constant 3.200000e+01 : f32
    %18 = vector.broadcast %cst_11 : f32 to vector<16x1xf32>
    %19 = arith.divf %17, %18 : vector<16x1xf32>
    %20 = vector.broadcast %12 : vector<16x1xf32> to vector<16x32xf32>
    %21 = arith.subf %4, %20 : vector<16x32xf32>
    %cst_12 = arith.constant 9.99999974E-6 : f32
    %22 = vector.broadcast %cst_12 : f32 to vector<16x1xf32>
    %23 = arith.addf %19, %22 : vector<16x1xf32>
    %24 = math.rsqrt %23 : vector<16x1xf32>
    %25 = vector.broadcast %24 : vector<16x1xf32> to vector<16x32xf32>
    %26 = arith.mulf %21, %25 : vector<16x32xf32>
    %27 = vector.broadcast %6 : vector<1x32xf32> to vector<16x32xf32>
    %28 = arith.mulf %26, %27 : vector<16x32xf32>
    %29 = vector.broadcast %8 : vector<1x32xf32> to vector<16x32xf32>
    %30 = arith.addf %28, %29 : vector<16x32xf32>
    %31 = arith.truncf %30 : vector<16x32xf32> to vector<16x32xbf16>
    %c0_13 = arith.constant 0 : index
    %c0_14 = arith.constant 0 : index
    %c0_15 = arith.constant 0 : index
    %32 = vector.load %arg9[%c0_13, %c0_14, %c0_15] : memref<1x32x48xbf16, #tpu.memory_space<vmem>>, vector<1x32x48xbf16>
    %33 = vector.shape_cast %32 : vector<1x32x48xbf16> to vector<32x48xbf16>
    %cst_16 = arith.constant dense<0.000000e+00> : vector<16x48xf32>
    %34 = tpu.matmul %31, %33, %cst_16 {dimension_numbers = #tpu.dot_dimension_numbers<[1], [0], [0], [1], [0, 0, 1, 1], [], []>} : vector<16x32xbf16>, vector<32x48xbf16>, vector<16x48xf32> -> vector<16x48xf32>
    %35 = vector.shape_cast %34 : vector<16x48xf32> to vector<2x8x48xf32>
    %36 = tpu.iota {dimensions = array<i32: 2>} : vector<1x1x8xi32>
    %c5_i32 = arith.constant 5 : i32
    %37 = vector.broadcast %c5_i32 : i32 to vector<1x1x8xi32>
    %38 = arith.cmpi slt, %36, %37 : vector<1x1x8xi32>
    %cst_17 = arith.constant 0.000000e+00 : f32
    %cst_18 = arith.constant -1.000000e+30 : f32
    %39 = vector.broadcast %cst_17 : f32 to vector<1x1x8xf32>
    %40 = vector.broadcast %cst_18 : f32 to vector<1x1x8xf32>
    %41 = arith.select %38, %39, %40 : vector<1x1x8xi1>, vector<1x1x8xf32>
    %42 = vector.extract_strided_slice %35 {offsets = [0, 0, 0], sizes = [2, 8, 8], strides = [1, 1, 1]} : vector<2x8x48xf32> to vector<2x8x8xf32>
    %43 = vector.extract_strided_slice %35 {offsets = [0, 0, 16], sizes = [2, 8, 8], strides = [1, 1, 1]} : vector<2x8x48xf32> to vector<2x8x8xf32>
    %44 = vector.extract_strided_slice %35 {offsets = [0, 0, 32], sizes = [2, 8, 8], strides = [1, 1, 1]} : vector<2x8x48xf32> to vector<2x8x8xf32>
    "tpu.trace_start"() <{level = 10 : i32, message = "bqd,bkd->bqk"}> : () -> ()
    %cst_19 = arith.constant dense<0.000000e+00> : vector<2x8x8xf32>
    %45 = tpu.matmul %42, %43, %cst_19 {dimension_numbers = #tpu.dot_dimension_numbers<[2], [2], [1], [1], [0, 0, 0, 1, 1, 1], [0], [0]>} : vector<2x8x8xf32>, vector<2x8x8xf32>, vector<2x8x8xf32> -> vector<2x8x8xf32>
    "tpu.trace_stop"() : () -> ()
    %46 = vector.broadcast %41 : vector<1x1x8xf32> to vector<2x8x8xf32>
    %47 = arith.addf %45, %46 : vector<2x8x8xf32>
    %cst_20 = arith.constant dense<0xFF800000> : vector<2x8xf32>
    %48 = vector.multi_reduction <maximumf>, %47, %cst_20 [2] : vector<2x8x8xf32> to vector<2x8xf32>
    %49 = vector.shape_cast %48 : vector<2x8xf32> to vector<2x8x1xf32>
    %50 = vector.broadcast %49 : vector<2x8x1xf32> to vector<2x8x8xf32>
    %51 = arith.subf %47, %50 : vector<2x8x8xf32>
    %52 = math.exp %51 : vector<2x8x8xf32>
    %cst_21 = arith.constant dense<0.000000e+00> : vector<2x8xf32>
    %53 = vector.multi_reduction <add>, %52, %cst_21 [2] : vector<2x8x8xf32> to vector<2x8xf32>
    %54 = vector.shape_cast %53 : vector<2x8xf32> to vector<2x8x1xf32>
    %55 = tpu.reciprocal %54 {approx = true} : vector<2x8x1xf32> -> vector<2x8x1xf32>
    %56 = vector.broadcast %55 : vector<2x8x1xf32> to vector<2x8x8xf32>
    %57 = arith.mulf %52, %56 : vector<2x8x8xf32>
    "tpu.trace_start"() <{level = 10 : i32, message = "bqk,bkd->bqd"}> : () -> ()
    %cst_22 = arith.constant dense<0.000000e+00> : vector<2x8x8xf32>
    %58 = tpu.matmul %57, %44, %cst_22 {dimension_numbers = #tpu.dot_dimension_numbers<[2], [1], [1], [2], [0, 0, 0, 1, 1, 2], [0], [0]>} : vector<2x8x8xf32>, vector<2x8x8xf32>, vector<2x8x8xf32> -> vector<2x8x8xf32>
    "tpu.trace_stop"() : () -> ()
    %59 = vector.extract_strided_slice %35 {offsets = [0, 0, 8], sizes = [2, 8, 8], strides = [1, 1, 1]} : vector<2x8x48xf32> to vector<2x8x8xf32>
    %60 = vector.extract_strided_slice %35 {offsets = [0, 0, 24], sizes = [2, 8, 8], strides = [1, 1, 1]} : vector<2x8x48xf32> to vector<2x8x8xf32>
    %61 = vector.extract_strided_slice %35 {offsets = [0, 0, 40], sizes = [2, 8, 8], strides = [1, 1, 1]} : vector<2x8x48xf32> to vector<2x8x8xf32>
    "tpu.trace_start"() <{level = 10 : i32, message = "bqd,bkd->bqk"}> : () -> ()
    %cst_23 = arith.constant dense<0.000000e+00> : vector<2x8x8xf32>
    %62 = tpu.matmul %59, %60, %cst_23 {dimension_numbers = #tpu.dot_dimension_numbers<[2], [2], [1], [1], [0, 0, 0, 1, 1, 1], [0], [0]>} : vector<2x8x8xf32>, vector<2x8x8xf32>, vector<2x8x8xf32> -> vector<2x8x8xf32>
    "tpu.trace_stop"() : () -> ()
    %63 = vector.broadcast %41 : vector<1x1x8xf32> to vector<2x8x8xf32>
    %64 = arith.addf %62, %63 : vector<2x8x8xf32>
    %cst_24 = arith.constant dense<0xFF800000> : vector<2x8xf32>
    %65 = vector.multi_reduction <maximumf>, %64, %cst_24 [2] : vector<2x8x8xf32> to vector<2x8xf32>
    %66 = vector.shape_cast %65 : vector<2x8xf32> to vector<2x8x1xf32>
    %67 = vector.broadcast %66 : vector<2x8x1xf32> to vector<2x8x8xf32>
    %68 = arith.subf %64, %67 : vector<2x8x8xf32>
    %69 = math.exp %68 : vector<2x8x8xf32>
    %cst_25 = arith.constant dense<0.000000e+00> : vector<2x8xf32>
    %70 = vector.multi_reduction <add>, %69, %cst_25 [2] : vector<2x8x8xf32> to vector<2x8xf32>
    %71 = vector.shape_cast %70 : vector<2x8xf32> to vector<2x8x1xf32>
    %72 = tpu.reciprocal %71 {approx = true} : vector<2x8x1xf32> -> vector<2x8x1xf32>
    %73 = vector.broadcast %72 : vector<2x8x1xf32> to vector<2x8x8xf32>
    %74 = arith.mulf %69, %73 : vector<2x8x8xf32>
    "tpu.trace_start"() <{level = 10 : i32, message = "bqk,bkd->bqd"}> : () -> ()
    %cst_26 = arith.constant dense<0.000000e+00> : vector<2x8x8xf32>
    %75 = tpu.matmul %74, %61, %cst_26 {dimension_numbers = #tpu.dot_dimension_numbers<[2], [1], [1], [2], [0, 0, 0, 1, 1, 2], [0], [0]>} : vector<2x8x8xf32>, vector<2x8x8xf32>, vector<2x8x8xf32> -> vector<2x8x8xf32>
    "tpu.trace_stop"() : () -> ()
    %76 = tpu.concatenate %58, %75 in 2 : vector<2x8x8xf32>, vector<2x8x8xf32> -> vector<2x8x16xf32>
    %77 = vector.shape_cast %76 : vector<2x8x16xf32> to vector<16x16xf32>
    %78 = arith.truncf %77 : vector<16x16xf32> to vector<16x16xbf16>
    %c0_27 = arith.constant 0 : index
    %c0_28 = arith.constant 0 : index
    %c0_29 = arith.constant 0 : index
    %79 = vector.load %arg10[%c0_27, %c0_28, %c0_29] : memref<1x16x32xbf16, #tpu.memory_space<vmem>>, vector<1x16x32xbf16>
    %80 = vector.shape_cast %79 : vector<1x16x32xbf16> to vector<16x32xbf16>
    %cst_30 = arith.constant dense<0.000000e+00> : vector<16x32xf32>
    %81 = tpu.matmul %78, %80, %cst_30 {dimension_numbers = #tpu.dot_dimension_numbers<[1], [0], [0], [1], [0, 0, 1, 1], [], []>} : vector<16x16xbf16>, vector<16x32xbf16>, vector<16x32xf32> -> vector<16x32xf32>
    %c0_31 = arith.constant 0 : index
    %c0_32 = arith.constant 0 : index
    %c0_33 = arith.constant 0 : index
    %82 = vector.load %arg11[%c0_31, %c0_32, %c0_33] : memref<1x1x32xf32, #tpu.memory_space<vmem>>, vector<1x1x32xf32>
    %83 = vector.shape_cast %82 : vector<1x1x32xf32> to vector<1x32xf32>
    %84 = vector.broadcast %83 : vector<1x32xf32> to vector<16x32xf32>
    %85 = arith.addf %81, %84 : vector<16x32xf32>
    %86 = arith.addf %4, %85 : vector<16x32xf32>
    %c0_34 = arith.constant 0 : index
    %c0_35 = arith.constant 0 : index
    %c0_36 = arith.constant 0 : index
    %87 = vector.load %arg12[%c0_34, %c0_35, %c0_36] : memref<1x1x32xf32, #tpu.memory_space<vmem>>, vector<1x1x32xf32>
    %88 = vector.shape_cast %87 : vector<1x1x32xf32> to vector<1x32xf32>
    %c0_37 = arith.constant 0 : index
    %c0_38 = arith.constant 0 : index
    %c0_39 = arith.constant 0 : index
    %89 = vector.load %arg13[%c0_37, %c0_38, %c0_39] : memref<1x1x32xf32, #tpu.memory_space<vmem>>, vector<1x1x32xf32>
    %90 = vector.shape_cast %89 : vector<1x1x32xf32> to vector<1x32xf32>
    %cst_40 = arith.constant dense<0.000000e+00> : vector<16xf32>
    %91 = vector.multi_reduction <add>, %86, %cst_40 [1] : vector<16x32xf32> to vector<16xf32>
    %92 = vector.shape_cast %91 : vector<16xf32> to vector<16x1xf32>
    %cst_41 = arith.constant 3.200000e+01 : f32
    %93 = vector.broadcast %cst_41 : f32 to vector<16x1xf32>
    %94 = arith.divf %92, %93 : vector<16x1xf32>
    %95 = vector.broadcast %94 : vector<16x1xf32> to vector<16x32xf32>
    %96 = arith.subf %86, %95 : vector<16x32xf32>
    %97 = arith.mulf %96, %96 : vector<16x32xf32>
    %cst_42 = arith.constant dense<0.000000e+00> : vector<16xf32>
    %98 = vector.multi_reduction <add>, %97, %cst_42 [1] : vector<16x32xf32> to vector<16xf32>
    %99 = vector.shape_cast %98 : vector<16xf32> to vector<16x1xf32>
    %cst_43 = arith.constant 3.200000e+01 : f32
    %100 = vector.broadcast %cst_43 : f32 to vector<16x1xf32>
    %101 = arith.divf %99, %100 : vector<16x1xf32>
    %102 = vector.broadcast %94 : vector<16x1xf32> to vector<16x32xf32>
    %103 = arith.subf %86, %102 : vector<16x32xf32>
    %cst_44 = arith.constant 9.99999974E-6 : f32
    %104 = vector.broadcast %cst_44 : f32 to vector<16x1xf32>
    %105 = arith.addf %101, %104 : vector<16x1xf32>
    %106 = math.rsqrt %105 : vector<16x1xf32>
    %107 = vector.broadcast %106 : vector<16x1xf32> to vector<16x32xf32>
    %108 = arith.mulf %103, %107 : vector<16x32xf32>
    %109 = vector.broadcast %88 : vector<1x32xf32> to vector<16x32xf32>
    %110 = arith.mulf %108, %109 : vector<16x32xf32>
    %111 = vector.broadcast %90 : vector<1x32xf32> to vector<16x32xf32>
    %112 = arith.addf %110, %111 : vector<16x32xf32>
    %113 = arith.truncf %112 : vector<16x32xf32> to vector<16x32xbf16>
    %c0_45 = arith.constant 0 : index
    %c0_46 = arith.constant 0 : index
    %c0_47 = arith.constant 0 : index
    %114 = vector.load %arg14[%c0_45, %c0_46, %c0_47] : memref<1x32x64xbf16, #tpu.memory_space<vmem>>, vector<1x32x64xbf16>
    %115 = vector.shape_cast %114 : vector<1x32x64xbf16> to vector<32x64xbf16>
    %cst_48 = arith.constant dense<0.000000e+00> : vector<16x64xf32>
    %116 = tpu.matmul %113, %115, %cst_48 {dimension_numbers = #tpu.dot_dimension_numbers<[1], [0], [0], [1], [0, 0, 1, 1], [], []>} : vector<16x32xbf16>, vector<32x64xbf16>, vector<16x64xf32> -> vector<16x64xf32>
    %c0_49 = arith.constant 0 : index
    %c0_50 = arith.constant 0 : index
    %c0_51 = arith.constant 0 : index
    %117 = vector.load %arg15[%c0_49, %c0_50, %c0_51] : memref<1x1x64xf32, #tpu.memory_space<vmem>>, vector<1x1x64xf32>
    %118 = vector.shape_cast %117 : vector<1x1x64xf32> to vector<1x64xf32>
    %119 = vector.broadcast %118 : vector<1x64xf32> to vector<16x64xf32>
    %120 = arith.addf %116, %119 : vector<16x64xf32>
    %cst_52 = arith.constant 5.000000e-01 : f32
    %121 = vector.broadcast %cst_52 : f32 to vector<16x64xf32>
    %122 = arith.mulf %121, %120 : vector<16x64xf32>
    %cst_53 = arith.constant 0.707106769 : f32
    %123 = vector.broadcast %cst_53 : f32 to vector<16x64xf32>
    %124 = arith.mulf %120, %123 : vector<16x64xf32>
    %125 = math.erf %124 : vector<16x64xf32>
    %cst_54 = arith.constant 1.000000e+00 : f32
    %126 = vector.broadcast %cst_54 : f32 to vector<16x64xf32>
    %127 = arith.addf %126, %125 : vector<16x64xf32>
    %128 = arith.mulf %122, %127 : vector<16x64xf32>
    %129 = arith.truncf %128 : vector<16x64xf32> to vector<16x64xbf16>
    %c0_55 = arith.constant 0 : index
    %c0_56 = arith.constant 0 : index
    %c0_57 = arith.constant 0 : index
    %130 = vector.load %arg16[%c0_55, %c0_56, %c0_57] : memref<1x64x32xbf16, #tpu.memory_space<vmem>>, vector<1x64x32xbf16>
    %131 = vector.shape_cast %130 : vector<1x64x32xbf16> to vector<64x32xbf16>
    %cst_58 = arith.constant dense<0.000000e+00> : vector<16x32xf32>
    %132 = tpu.matmul %129, %131, %cst_58 {dimension_numbers = #tpu.dot_dimension_numbers<[1], [0], [0], [1], [0, 0, 1, 1], [], []>} : vector<16x64xbf16>, vector<64x32xbf16>, vector<16x32xf32> -> vector<16x32xf32>
    %c0_59 = arith.constant 0 : index
    %c0_60 = arith.constant 0 : index
    %c0_61 = arith.constant 0 : index
    %133 = vector.load %arg17[%c0_59, %c0_60, %c0_61] : memref<1x1x32xf32, #tpu.memory_space<vmem>>, vector<1x1x32xf32>
    %134 = vector.shape_cast %133 : vector<1x1x32xf32> to vector<1x32xf32>
    %135 = vector.broadcast %134 : vector<1x32xf32> to vector<16x32xf32>
    %136 = arith.addf %132, %135 : vector<16x32xf32>
    %137 = arith.addf %86, %136 : vector<16x32xf32>
    %138 = vector.shape_cast %137 : vector<16x32xf32> to vector<2x8x32xf32>
    %c0_62 = arith.constant 0 : index
    %c0_63 = arith.constant 0 : index
    %c0_64 = arith.constant 0 : index
    %139 = vector.load %arg19[%c0_62, %c0_63, %c0_64] : memref<2x8x32xf32, #tpu.memory_space<vmem>>, vector<2x8x32xf32>
    tpu.vector_store %arg19[%c0_62, %c0_63, %c0_64], %138 {strides = array<i32>} : memref<2x8x32xf32, #tpu.memory_space<vmem>>, vector<2x8x32xf32>,
    %c1_i32 = arith.constant 1 : i32
    %140 = arith.cmpi eq, %arg1, %c1_i32 : i32
    %141 = arith.extui %140 : i1 to i32
    %c0_i32_65 = arith.constant 0 : i32
    %142 = arith.cmpi ne, %141, %c0_i32_65 : i32
    scf.if %142 {
      %143 = vector.extract_strided_slice %138 {offsets = [0, 0, 0], sizes = [2, 1, 32], strides = [1, 1, 1]} : vector<2x8x32xf32> to vector<2x1x32xf32>
      %c0_66 = arith.constant 0 : index
      %c0_67 = arith.constant 0 : index
      %c0_68 = arith.constant 0 : index
      %144 = vector.load %arg18[%c0_66, %c0_67, %c0_68] : memref<2x1x32xf32, #tpu.memory_space<vmem>>, vector<2x1x32xf32>
      tpu.vector_store %arg18[%c0_66, %c0_67, %c0_68], %143 {strides = array<i32>} : memref<2x1x32xf32, #tpu.memory_space<vmem>>, vector<2x1x32xf32>,
    } else {
    }
    return
  }
  func.func @transform_0(%arg0: i32, %arg1: i32) -> (i32, i32) {
    %c0_i32 = arith.constant 0 : i32
    %c0_i32_0 = arith.constant 0 : i32
    return %arg0, %c0_i32 : i32, i32
  }
  func.func @transform_1(%arg0: i32, %arg1: i32) -> (i32, i32) {
    %c0_i32 = arith.constant 0 : i32
    %c0_i32_0 = arith.constant 0 : i32
    %c0_i32_1 = arith.constant 0 : i32
    return %c0_i32, %c0_i32_0 : i32, i32
  }
  func.func @transform_2(%arg0: i32, %arg1: i32) -> (i32, i32) {
    %c0_i32 = arith.constant 0 : i32
    %c0_i32_0 = arith.constant 0 : i32
    %c0_i32_1 = arith.constant 0 : i32
    return %c0_i32, %c0_i32_0 : i32, i32
  }
  func.func @transform_3(%arg0: i32, %arg1: i32) -> (i32, i32) {
    %c0_i32 = arith.constant 0 : i32
    %c0_i32_0 = arith.constant 0 : i32
    %c0_i32_1 = arith.constant 0 : i32
    return %c0_i32, %c0_i32_0 : i32, i32
  }
  func.func @transform_4(%arg0: i32, %arg1: i32) -> (i32, i32) {
    %c0_i32 = arith.constant 0 : i32
    %c0_i32_0 = arith.constant 0 : i32
    %c0_i32_1 = arith.constant 0 : i32
    return %c0_i32, %c0_i32_0 : i32, i32
  }
  func.func @transform_5(%arg0: i32, %arg1: i32) -> (i32, i32, i32) {
    %c0_i32 = arith.constant 0 : i32
    %c0_i32_0 = arith.constant 0 : i32
    %c0_i32_1 = arith.constant 0 : i32
    return %arg1, %c0_i32, %c0_i32_0 : i32, i32, i32
  }
  func.func @transform_6(%arg0: i32, %arg1: i32) -> (i32, i32, i32) {
    %c0_i32 = arith.constant 0 : i32
    %c0_i32_0 = arith.constant 0 : i32
    %c0_i32_1 = arith.constant 0 : i32
    return %arg1, %c0_i32, %c0_i32_0 : i32, i32, i32
  }
  func.func @transform_7(%arg0: i32, %arg1: i32) -> (i32, i32, i32) {
    %c0_i32 = arith.constant 0 : i32
    %c0_i32_0 = arith.constant 0 : i32
    %c0_i32_1 = arith.constant 0 : i32
    return %arg1, %c0_i32, %c0_i32_0 : i32, i32, i32
  }
  func.func @transform_8(%arg0: i32, %arg1: i32) -> (i32, i32, i32) {
    %c0_i32 = arith.constant 0 : i32
    %c0_i32_0 = arith.constant 0 : i32
    %c0_i32_1 = arith.constant 0 : i32
    return %arg1, %c0_i32, %c0_i32_0 : i32, i32, i32
  }
  func.func @transform_9(%arg0: i32, %arg1: i32) -> (i32, i32, i32) {
    %c0_i32 = arith.constant 0 : i32
    %c0_i32_0 = arith.constant 0 : i32
    %c0_i32_1 = arith.constant 0 : i32
    return %arg1, %c0_i32, %c0_i32_0 : i32, i32, i32
  }
  func.func @transform_10(%arg0: i32, %arg1: i32) -> (i32, i32, i32) {
    %c0_i32 = arith.constant 0 : i32
    %c0_i32_0 = arith.constant 0 : i32
    %c0_i32_1 = arith.constant 0 : i32
    return %arg1, %c0_i32, %c0_i32_0 : i32, i32, i32
  }
  func.func @transform_11(%arg0: i32, %arg1: i32) -> (i32, i32, i32) {
    %c0_i32 = arith.constant 0 : i32
    %c0_i32_0 = arith.constant 0 : i32
    %c0_i32_1 = arith.constant 0 : i32
    return %arg1, %c0_i32, %c0_i32_0 : i32, i32, i32
  }
  func.func @transform_12(%arg0: i32, %arg1: i32) -> (i32, i32, i32) {
    %c0_i32 = arith.constant 0 : i32
    %c0_i32_0 = arith.constant 0 : i32
    %c0_i32_1 = arith.constant 0 : i32
    return %arg1, %c0_i32, %c0_i32_0 : i32, i32, i32
  }
  func.func @transform_13(%arg0: i32, %arg1: i32) -> (i32, i32, i32) {
    %c0_i32 = arith.constant 0 : i32
    %c0_i32_0 = arith.constant 0 : i32
    %c0_i32_1 = arith.constant 0 : i32
    return %arg1, %c0_i32, %c0_i32_0 : i32, i32, i32
  }
  func.func @transform_14(%arg0: i32, %arg1: i32) -> (i32, i32, i32) {
    %c0_i32 = arith.constant 0 : i32
    %c0_i32_0 = arith.constant 0 : i32
    %c0_i32_1 = arith.constant 0 : i32
    return %arg1, %c0_i32, %c0_i32_0 : i32, i32, i32
  }
  func.func @transform_15(%arg0: i32, %arg1: i32) -> (i32, i32, i32) {
    %c0_i32 = arith.constant 0 : i32
    %c0_i32_0 = arith.constant 0 : i32
    %c0_i32_1 = arith.constant 0 : i32
    return %arg1, %c0_i32, %c0_i32_0 : i32, i32, i32
  }
  func.func @transform_16(%arg0: i32, %arg1: i32) -> (i32, i32, i32) {
    %c0_i32 = arith.constant 0 : i32
    %c0_i32_0 = arith.constant 0 : i32
    %c0_i32_1 = arith.constant 0 : i32
    return %arg0, %c0_i32, %c0_i32_0 : i32, i32, i32
  }
}

</mosaic_0001>

<llo_original>
// kernel: tpu_custom_call.1
$region0: #{tpu_custom_call.1}
  #allocation0 [shape = 'u32[]', space=smem, size = 0x4, offset = 0x4, fixed_abs, tag = 'smem constant byte address 0x4 - core index']
  #allocation1 [shape = 'u32[144,128]{1,0:T(1,128)}', space=vmem, size = 0x12000, scoped, tag = 'internal scratch']
  #allocation2 [shape = 'f32[2,8,32]{2,1,0:T(8,128)}', space=vmem, size = 0x2000, scoped, tag = 'scratch operand']
  %s0 = inlined_call_operand.vmem [shape: bf16[8,192], index: 0, kind: input, shape index: {}]
  %s1 = inlined_call_operand.vmem [shape: bf16[192,32], index: 1, kind: input, shape index: {}]
  %s2 = inlined_call_operand.vmem [shape: f32[1,32], index: 2, kind: input, shape index: {}]
  %s3 = inlined_call_operand.vmem [shape: f32[1,32], index: 3, kind: input, shape index: {}]
  %s4 = inlined_call_operand.vmem [shape: f32[8,32], index: 4, kind: input, shape index: {}]
  %s5 = inlined_call_operand.vmem [shape: f32[2,1,32], index: 5, kind: input, shape index: {}]
  %s6 = inlined_call_operand.vmem [shape: f32[2,1,32], index: 6, kind: input, shape index: {}]
  %s7 = inlined_call_operand.vmem [shape: bf16[2,32,48], index: 7, kind: input, shape index: {}]
  %s8 = inlined_call_operand.vmem [shape: bf16[2,16,32], index: 8, kind: input, shape index: {}]
  %s9 = inlined_call_operand.vmem [shape: f32[2,1,32], index: 9, kind: input, shape index: {}]
  %s10 = inlined_call_operand.vmem [shape: f32[2,1,32], index: 10, kind: input, shape index: {}]
  %s11 = inlined_call_operand.vmem [shape: f32[2,1,32], index: 11, kind: input, shape index: {}]
  %s12 = inlined_call_operand.vmem [shape: bf16[2,32,64], index: 12, kind: input, shape index: {}]
  %s13 = inlined_call_operand.vmem [shape: f32[2,1,64], index: 13, kind: input, shape index: {}]
  %s14 = inlined_call_operand.vmem [shape: bf16[2,64,32], index: 14, kind: input, shape index: {}]
  %s15 = inlined_call_operand.vmem [shape: f32[2,1,32], index: 15, kind: input, shape index: {}]
  %s16 = inlined_call_operand.hbm [shape: f32[2,1,32], index: 16, kind: output, shape index: {}]
  %s17 = sld [smem:[#allocation0]]
  $region105: #{tpu_custom_call.1} parent=0
    _
  %s19 = ssub.s32 1, %s17
  %s20 = scalar_select 0, %s19, %s17
  $region1: #{tpu_custom_call.1} parent=0
    #allocation3 [shape = 'u8[1024]{0}', space=vmem, size = 0x400, scoped, tag = 'output window, operand 0, single buffered']
    #allocation4 [shape = 's32[2]{0}', space=sflag, size = 0x8, scoped, tag = 'scoped memory for tpu_custom_call.1']
    %21 = vsyncpa [#allocation4], 0
    loop: start=0, step=1, limit=4
    $region2: #{tpu_custom_call.1} parent=1 // loop_pre_header
      _
    $region3: #{tpu_custom_call.1} parent=1 // loop_header
      %s23 = sphi 0, %s27
      %p24 = scmp.ge.s32.totalorder %s23, 4
      %s30 = sphi 0, %s42
      %s31 = sphi 0, %s38
      %s32 = sphi 0, %s30
      %s33 = sphi 0, %s31
      %s34 = sphi 0, %s32
      %s35 = sphi 0, %s33
      %s45 = sphi 0, %s47
      %s48 = sphi 0, %s45
      %s49 = sphi 0, %s48
      %s65 = sphi 0, %s49
      %s69 = sphi 0, %s69
      %s71 = sphi 0, %s69
      %s72 = sphi 0, %s71
      %s86 = sphi 0, %s72
      %s90 = sphi 0, %s90
      %s92 = sphi 0, %s90
      %s93 = sphi 0, %s92
      %s107 = sphi 0, %s93
      %s111 = sphi 0, %s111
      %s113 = sphi 0, %s111
      %s114 = sphi 0, %s113
      %s128 = sphi 0, %s114
      %s132 = sphi 0, %s132
      %s134 = sphi 0, %s132
      %s135 = sphi 0, %s134
      %s149 = sphi 0, %s135
      %s155 = sphi 0, %s157
      %s158 = sphi 0, %s155
      %s159 = sphi 0, %s158
      %s175 = sphi 0, %s159
      %s181 = sphi 0, %s183
      %s184 = sphi 0, %s181
      %s185 = sphi 0, %s184
      %s201 = sphi 0, %s185
      %s207 = sphi 0, %s209
      %s210 = sphi 0, %s207
      %s211 = sphi 0, %s210
      %s227 = sphi 0, %s211
      %s233 = sphi 0, %s235
      %s236 = sphi 0, %s233
      %s237 = sphi 0, %s236
      %s253 = sphi 0, %s237
      %s259 = sphi 0, %s261
      %s262 = sphi 0, %s259
      %s263 = sphi 0, %s262
      %s279 = sphi 0, %s263
      %s285 = sphi 0, %s287
      %s288 = sphi 0, %s285
      %s289 = sphi 0, %s288
      %s305 = sphi 0, %s289
      %s311 = sphi 0, %s313
      %s314 = sphi 0, %s311
      %s315 = sphi 0, %s314
      %s331 = sphi 0, %s315
      %s337 = sphi 0, %s339
      %s340 = sphi 0, %s337
      %s341 = sphi 0, %s340
      %s357 = sphi 0, %s341
      %s363 = sphi 0, %s365
      %s366 = sphi 0, %s363
      %s367 = sphi 0, %s366
      %s383 = sphi 0, %s367
      %s389 = sphi 0, %s391
      %s392 = sphi 0, %s389
      %s393 = sphi 0, %s392
      %s409 = sphi 0, %s393
      %s415 = sphi 0, %s417
      %s418 = sphi 0, %s415
      %s419 = sphi 0, %s418
      %s435 = sphi 0, %s419
      %s441 = sphi 0, %s443
      %s444 = sphi 0, %s441
      %s445 = sphi 0, %s444
      %s461 = sphi 0, %s445
    $region4: #{tpu_custom_call.1} parent=1 // loop_header_branch
      %26 = sbr.rel (%p24) target = $region8
    $region5: #{tpu_custom_call.1} parent=1 // loop_body
      %s28 = ssub.s32 %s23, 1
      %s29 = ssub.s32 %s23, 2
      %s36 = sadd.s32 1, %s31
      %p37 = scmp.ge.s32.totalorder %s36, 2
      %s38 = scalar_select %p37, 0, %s36
      %s39 = sadd.s32 1, %s30
      %s40 = scalar_select %p37, %s39, %s30
      %p41 = scmp.ge.s32.totalorder %s40, 1
      %s42 = scalar_select %p41, 0, %s40
      %s43 = ssub.s32 %s30, %s42
      %p44 = scmp.eq.s32.totalorder %s43, 0
      %s46 = sadd.s32 %s45, 1
      %s47 = scalar_select %p44, %s45, %s46
      %p50 = pneg %p44
      %p51 = scmp.eq.s32.totalorder %s23, 1
      %p52 = por %p50, %p51
      %p53 = scmp.ne.s32.totalorder %s45, %s48
      %p54 = scmp.eq.s32.totalorder %s23, 0
      %p55 = por %p53, %p54
      %p56 = scmp.ne.s32.totalorder %s45, %s48
      %p57 = scmp.eq.s32.totalorder %s28, 1
      %p58 = por %p56, %p57
      %p59 = scmp.ne.s32.totalorder %s48, %s49
      %p60 = scmp.eq.s32.totalorder %s28, 0
      %p61 = por %p59, %p60
      %p62 = scmp.ne.s32.totalorder %s48, %s49
      %p63 = scmp.eq.s32.totalorder %s29, 1
      %p64 = por %p62, %p63
      %p66 = scmp.ne.s32.totalorder %s49, %s65
      %p67 = scmp.eq.s32.totalorder %s29, 0
      %p68 = por %p66, %p67
      %s70 = sadd.s32 %s69, 1
      %p73 = scmp.eq.s32.totalorder %s23, 1
      %p74 = scmp.ne.s32.totalorder %s69, %s71
      %p75 = scmp.eq.s32.totalorder %s23, 0
      %p76 = por %p74, %p75
      %p77 = scmp.ne.s32.totalorder %s69, %s71
      %p78 = scmp.eq.s32.totalorder %s28, 1
      %p79 = por %p77, %p78
      %p80 = scmp.ne.s32.totalorder %s71, %s72
      %p81 = scmp.eq.s32.totalorder %s28, 0
      %p82 = por %p80, %p81
      %p83 = scmp.ne.s32.totalorder %s71, %s72
      %p84 = scmp.eq.s32.totalorder %s29, 1
      %p85 = por %p83, %p84
      %p87 = scmp.ne.s32.totalorder %s72, %s86
      %p88 = scmp.eq.s32.totalorder %s29, 0
      %p89 = por %p87, %p88
      %s91 = sadd.s32 %s90, 1
      %p94 = scmp.eq.s32.totalorder %s23, 1
      %p95 = scmp.ne.s32.totalorder %s90, %s92
      %p96 = scmp.eq.s32.totalorder %s23, 0
      %p97 = por %p95, %p96
      %p98 = scmp.ne.s32.totalorder %s90, %s92
      %p99 = scmp.eq.s32.totalorder %s28, 1
      %p100 = por %p98, %p99
      %p101 = scmp.ne.s32.totalorder %s92, %s93
      %p102 = scmp.eq.s32.totalorder %s28, 0
      %p103 = por %p101, %p102
      %p104 = scmp.ne.s32.totalorder %s92, %s93
      %p105 = scmp.eq.s32.totalorder %s29, 1
      %p106 = por %p104, %p105
      %p108 = scmp.ne.s32.totalorder %s93, %s107
      %p109 = scmp.eq.s32.totalorder %s29, 0
      %p110 = por %p108, %p109
      %s112 = sadd.s32 %s111, 1
      %p115 = scmp.eq.s32.totalorder %s23, 1
      %p116 = scmp.ne.s32.totalorder %s111, %s113
      %p117 = scmp.eq.s32.totalorder %s23, 0
      %p118 = por %p116, %p117
      %p119 = scmp.ne.s32.totalorder %s111, %s113
      %p120 = scmp.eq.s32.totalorder %s28, 1
      %p121 = por %p119, %p120
      %p122 = scmp.ne.s32.totalorder %s113, %s114
      %p123 = scmp.eq.s32.totalorder %s28, 0
      %p124 = por %p122, %p123
      %p125 = scmp.ne.s32.totalorder %s113, %s114
      %p126 = scmp.eq.s32.totalorder %s29, 1
      %p127 = por %p125, %p126
      %p129 = scmp.ne.s32.totalorder %s114, %s128
      %p130 = scmp.eq.s32.totalorder %s29, 0
      %p131 = por %p129, %p130
      %s133 = sadd.s32 %s132, 1
      %p136 = scmp.eq.s32.totalorder %s23, 1
      %p137 = scmp.ne.s32.totalorder %s132, %s134
      %p138 = scmp.eq.s32.totalorder %s23, 0
      %p139 = por %p137, %p138
      %p140 = scmp.ne.s32.totalorder %s132, %s134
      %p141 = scmp.eq.s32.totalorder %s28, 1
      %p142 = por %p140, %p141
      %p143 = scmp.ne.s32.totalorder %s134, %s135
      %p144 = scmp.eq.s32.totalorder %s28, 0
      %p145 = por %p143, %p144
      %p146 = scmp.ne.s32.totalorder %s134, %s135
      %p147 = scmp.eq.s32.totalorder %s29, 1
      %p148 = por %p146, %p147
      %p150 = scmp.ne.s32.totalorder %s135, %s149
      %p151 = scmp.eq.s32.totalorder %s29, 0
      %p152 = por %p150, %p151
      %s153 = ssub.s32 %s31, %s38
      %p154 = scmp.eq.s32.totalorder %s153, 0
      %s156 = sadd.s32 %s155, 1
      %s157 = scalar_select %p154, %s155, %s156
      %p160 = pneg %p154
      %p161 = scmp.eq.s32.totalorder %s23, 1
      %p162 = por %p160, %p161
      %p163 = scmp.ne.s32.totalorder %s155, %s158
      %p164 = scmp.eq.s32.totalorder %s23, 0
      %p165 = por %p163, %p164
      %p166 = scmp.ne.s32.totalorder %s155, %s158
      %p167 = scmp.eq.s32.totalorder %s28, 1
      %p168 = por %p166, %p167
      %p169 = scmp.ne.s32.totalorder %s158, %s159
      %p170 = scmp.eq.s32.totalorder %s28, 0
      %p171 = por %p169, %p170
      %p172 = scmp.ne.s32.totalorder %s158, %s159
      %p173 = scmp.eq.s32.totalorder %s29, 1
      %p174 = por %p172, %p173
      %p176 = scmp.ne.s32.totalorder %s159, %s175
      %p177 = scmp.eq.s32.totalorder %s29, 0
      %p178 = por %p176, %p177
      %s179 = ssub.s32 %s31, %s38
      %p180 = scmp.eq.s32.totalorder %s179, 0
      %s182 = sadd.s32 %s181, 1
      %s183 = scalar_select %p180, %s181, %s182
      %p186 = pneg %p180
      %p187 = scmp.eq.s32.totalorder %s23, 1
      %p188 = por %p186, %p187
      %p189 = scmp.ne.s32.totalorder %s181, %s184
      %p190 = scmp.eq.s32.totalorder %s23, 0
      %p191 = por %p189, %p190
      %p192 = scmp.ne.s32.totalorder %s181, %s184
      %p193 = scmp.eq.s32.totalorder %s28, 1
      %p194 = por %p192, %p193
      %p195 = scmp.ne.s32.totalorder %s184, %s185
      %p196 = scmp.eq.s32.totalorder %s28, 0
      %p197 = por %p195, %p196
      %p198 = scmp.ne.s32.totalorder %s184, %s185
      %p199 = scmp.eq.s32.totalorder %s29, 1
      %p200 = por %p198, %p199
      %p202 = scmp.ne.s32.totalorder %s185, %s201
      %p203 = scmp.eq.s32.totalorder %s29, 0
      %p204 = por %p202, %p203
      %s205 = ssub.s32 %s31, %s38
      %p206 = scmp.eq.s32.totalorder %s205, 0
      %s208 = sadd.s32 %s207, 1
      %s209 = scalar_select %p206, %s207, %s208
      %p212 = pneg %p206
      %p213 = scmp.eq.s32.totalorder %s23, 1
      %p214 = por %p212, %p213
      %p215 = scmp.ne.s32.totalorder %s207, %s210
      %p216 = scmp.eq.s32.totalorder %s23, 0
      %p217 = por %p215, %p216
      %p218 = scmp.ne.s32.totalorder %s207, %s210
      %p219 = scmp.eq.s32.totalorder %s28, 1
      %p220 = por %p218, %p219
      %p221 = scmp.ne.s32.totalorder %s210, %s211
      %p222 = scmp.eq.s32.totalorder %s28, 0
      %p223 = por %p221, %p222
      %p224 = scmp.ne.s32.totalorder %s210, %s211
      %p225 = scmp.eq.s32.totalorder %s29, 1
      %p226 = por %p224, %p225
      %p228 = scmp.ne.s32.totalorder %s211, %s227
      %p229 = scmp.eq.s32.totalorder %s29, 0
      %p230 = por %p228, %p229
      %s231 = ssub.s32 %s31, %s38
      %p232 = scmp.eq.s32.totalorder %s231, 0
      %s234 = sadd.s32 %s233, 1
      %s235 = scalar_select %p232, %s233, %s234
      %p238 = pneg %p232
      %p239 = scmp.eq.s32.totalorder %s23, 1
      %p240 = por %p238, %p239
      %p241 = scmp.ne.s32.totalorder %s233, %s236
      %p242 = scmp.eq.s32.totalorder %s23, 0
      %p243 = por %p241, %p242
      %p244 = scmp.ne.s32.totalorder %s233, %s236
      %p245 = scmp.eq.s32.totalorder %s28, 1
      %p246 = por %p244, %p245
      %p247 = scmp.ne.s32.totalorder %s236, %s237
      %p248 = scmp.eq.s32.totalorder %s28, 0
      %p249 = por %p247, %p248
      %p250 = scmp.ne.s32.totalorder %s236, %s237
      %p251 = scmp.eq.s32.totalorder %s29, 1
      %p252 = por %p250, %p251
      %p254 = scmp.ne.s32.totalorder %s237, %s253
      %p255 = scmp.eq.s32.totalorder %s29, 0
      %p256 = por %p254, %p255
      %s257 = ssub.s32 %s31, %s38
      %p258 = scmp.eq.s32.totalorder %s257, 0
      %s260 = sadd.s32 %s259, 1
      %s261 = scalar_select %p258, %s259, %s260
      %p264 = pneg %p258
      %p265 = scmp.eq.s32.totalorder %s23, 1
      %p266 = por %p264, %p265
      %p267 = scmp.ne.s32.totalorder %s259, %s262
      %p268 = scmp.eq.s32.totalorder %s23, 0
      %p269 = por %p267, %p268
      %p270 = scmp.ne.s32.totalorder %s259, %s262
      %p271 = scmp.eq.s32.totalorder %s28, 1
      %p272 = por %p270, %p271
      %p273 = scmp.ne.s32.totalorder %s262, %s263
      %p274 = scmp.eq.s32.totalorder %s28, 0
      %p275 = por %p273, %p274
      %p276 = scmp.ne.s32.totalorder %s262, %s263
      %p277 = scmp.eq.s32.totalorder %s29, 1
      %p278 = por %p276, %p277
      %p280 = scmp.ne.s32.totalorder %s263, %s279
      %p281 = scmp.eq.s32.totalorder %s29, 0
      %p282 = por %p280, %p281
      %s283 = ssub.s32 %s31, %s38
      %p284 = scmp.eq.s32.totalorder %s283, 0
      %s286 = sadd.s32 %s285, 1
      %s287 = scalar_select %p284, %s285, %s286
      %p290 = pneg %p284
      %p291 = scmp.eq.s32.totalorder %s23, 1
      %p292 = por %p290, %p291
      %p293 = scmp.ne.s32.totalorder %s285, %s288
      %p294 = scmp.eq.s32.totalorder %s23, 0
      %p295 = por %p293, %p294
      %p296 = scmp.ne.s32.totalorder %s285, %s288
      %p297 = scmp.eq.s32.totalorder %s28, 1
      %p298 = por %p296, %p297
      %p299 = scmp.ne.s32.totalorder %s288, %s289
      %p300 = scmp.eq.s32.totalorder %s28, 0
      %p301 = por %p299, %p300
      %p302 = scmp.ne.s32.totalorder %s288, %s289
      %p303 = scmp.eq.s32.totalorder %s29, 1
      %p304 = por %p302, %p303
      %p306 = scmp.ne.s32.totalorder %s289, %s305
      %p307 = scmp.eq.s32.totalorder %s29, 0
      %p308 = por %p306, %p307
      %s309 = ssub.s32 %s31, %s38
      %p310 = scmp.eq.s32.totalorder %s309, 0
      %s312 = sadd.s32 %s311, 1
      %s313 = scalar_select %p310, %s311, %s312
      %p316 = pneg %p310
      %p317 = scmp.eq.s32.totalorder %s23, 1
      %p318 = por %p316, %p317
      %p319 = scmp.ne.s32.totalorder %s311, %s314
      %p320 = scmp.eq.s32.totalorder %s23, 0
      %p321 = por %p319, %p320
      %p322 = scmp.ne.s32.totalorder %s311, %s314
      %p323 = scmp.eq.s32.totalorder %s28, 1
      %p324 = por %p322, %p323
      %p325 = scmp.ne.s32.totalorder %s314, %s315
      %p326 = scmp.eq.s32.totalorder %s28, 0
      %p327 = por %p325, %p326
      %p328 = scmp.ne.s32.totalorder %s314, %s315
      %p329 = scmp.eq.s32.totalorder %s29, 1
      %p330 = por %p328, %p329
      %p332 = scmp.ne.s32.totalorder %s315, %s331
      %p333 = scmp.eq.s32.totalorder %s29, 0
      %p334 = por %p332, %p333
      %s335 = ssub.s32 %s31, %s38
      %p336 = scmp.eq.s32.totalorder %s335, 0
      %s338 = sadd.s32 %s337, 1
      %s339 = scalar_select %p336, %s337, %s338
      %p342 = pneg %p336
      %p343 = scmp.eq.s32.totalorder %s23, 1
      %p344 = por %p342, %p343
      %p345 = scmp.ne.s32.totalorder %s337, %s340
      %p346 = scmp.eq.s32.totalorder %s23, 0
      %p347 = por %p345, %p346
      %p348 = scmp.ne.s32.totalorder %s337, %s340
      %p349 = scmp.eq.s32.totalorder %s28, 1
      %p350 = por %p348, %p349
      %p351 = scmp.ne.s32.totalorder %s340, %s341
      %p352 = scmp.eq.s32.totalorder %s28, 0
      %p353 = por %p351, %p352
      %p354 = scmp.ne.s32.totalorder %s340, %s341
      %p355 = scmp.eq.s32.totalorder %s29, 1
      %p356 = por %p354, %p355
      %p358 = scmp.ne.s32.totalorder %s341, %s357
      %p359 = scmp.eq.s32.totalorder %s29, 0
      %p360 = por %p358, %p359
      %s361 = ssub.s32 %s31, %s38
      %p362 = scmp.eq.s32.totalorder %s361, 0
      %s364 = sadd.s32 %s363, 1
      %s365 = scalar_select %p362, %s363, %s364
      %p368 = pneg %p362
      %p369 = scmp.eq.s32.totalorder %s23, 1
      %p370 = por %p368, %p369
      %p371 = scmp.ne.s32.totalorder %s363, %s366
      %p372 = scmp.eq.s32.totalorder %s23, 0
      %p373 = por %p371, %p372
      %p374 = scmp.ne.s32.totalorder %s363, %s366
      %p375 = scmp.eq.s32.totalorder %s28, 1
      %p376 = por %p374, %p375
      %p377 = scmp.ne.s32.totalorder %s366, %s367
      %p378 = scmp.eq.s32.totalorder %s28, 0
      %p379 = por %p377, %p378
      %p380 = scmp.ne.s32.totalorder %s366, %s367
      %p381 = scmp.eq.s32.totalorder %s29, 1
      %p382 = por %p380, %p381
      %p384 = scmp.ne.s32.totalorder %s367, %s383
      %p385 = scmp.eq.s32.totalorder %s29, 0
      %p386 = por %p384, %p385
      %s387 = ssub.s32 %s31, %s38
      %p388 = scmp.eq.s32.totalorder %s387, 0
      %s390 = sadd.s32 %s389, 1
      %s391 = scalar_select %p388, %s389, %s390
      %p394 = pneg %p388
      %p395 = scmp.eq.s32.totalorder %s23, 1
      %p396 = por %p394, %p395
      %p397 = scmp.ne.s32.totalorder %s389, %s392
      %p398 = scmp.eq.s32.totalorder %s23, 0
      %p399 = por %p397, %p398
      %p400 = scmp.ne.s32.totalorder %s389, %s392
      %p401 = scmp.eq.s32.totalorder %s28, 1
      %p402 = por %p400, %p401
      %p403 = scmp.ne.s32.totalorder %s392, %s393
      %p404 = scmp.eq.s32.totalorder %s28, 0
      %p405 = por %p403, %p404
      %p406 = scmp.ne.s32.totalorder %s392, %s393
      %p407 = scmp.eq.s32.totalorder %s29, 1
      %p408 = por %p406, %p407
      %p410 = scmp.ne.s32.totalorder %s393, %s409
      %p411 = scmp.eq.s32.totalorder %s29, 0
      %p412 = por %p410, %p411
      %s413 = ssub.s32 %s31, %s38
      %p414 = scmp.eq.s32.totalorder %s413, 0
      %s416 = sadd.s32 %s415, 1
      %s417 = scalar_select %p414, %s415, %s416
      %p420 = pneg %p414
      %p421 = scmp.eq.s32.totalorder %s23, 1
      %p422 = por %p420, %p421
      %p423 = scmp.ne.s32.totalorder %s415, %s418
      %p424 = scmp.eq.s32.totalorder %s23, 0
      %p425 = por %p423, %p424
      %p426 = scmp.ne.s32.totalorder %s415, %s418
      %p427 = scmp.eq.s32.totalorder %s28, 1
      %p428 = por %p426, %p427
      %p429 = scmp.ne.s32.totalorder %s418, %s419
      %p430 = scmp.eq.s32.totalorder %s28, 0
      %p431 = por %p429, %p430
      %p432 = scmp.ne.s32.totalorder %s418, %s419
      %p433 = scmp.eq.s32.totalorder %s29, 1
      %p434 = por %p432, %p433
      %p436 = scmp.ne.s32.totalorder %s419, %s435
      %p437 = scmp.eq.s32.totalorder %s29, 0
      %p438 = por %p436, %p437
      %s439 = ssub.s32 %s30, %s42
      %p440 = scmp.eq.s32.totalorder %s439, 0
      %s442 = sadd.s32 %s441, 1
      %s443 = scalar_select %p440, %s441, %s442
      %p446 = pneg %p440
      %p447 = scmp.eq.s32.totalorder %s23, 1
      %p448 = por %p446, %p447
      %p449 = scmp.ne.s32.totalorder %s441, %s444
      %p450 = scmp.eq.s32.totalorder %s23, 0
      %p451 = por %p449, %p450
      %p452 = scmp.ne.s32.totalorder %s441, %s444
      %p453 = scmp.eq.s32.totalorder %s28, 1
      %p454 = por %p452, %p453
      %p455 = scmp.ne.s32.totalorder %s444, %s445
      %p456 = scmp.eq.s32.totalorder %s28, 0
      %p457 = por %p455, %p456
      %p458 = scmp.ne.s32.totalorder %s444, %s445
      %p459 = scmp.eq.s32.totalorder %s29, 1
      %p460 = por %p458, %p459
      %p462 = scmp.ne.s32.totalorder %s445, %s461
      %p463 = scmp.eq.s32.totalorder %s29, 0
      %p464 = por %p462, %p463
      %p465 = scmp.le.s32.totalorder 1, %s23
      %p466 = scmp.lt.s32.totalorder %s23, 3
      %p467 = pnand %p465, %p466
      %p468 = pneg %p467
      // Predicated region
      $region9: #{tpu_custom_call.1} parent=5 // pred_check
        _
      $region10: #{tpu_custom_call.1} parent=5 // pred_check_branch
        %470 = sbr.rel (%p467) target = $region12
      $region11: #{tpu_custom_call.1} parent=5 // pred_region
        %s471 = ssub.s32 %s23, 1
        // Predicated region
        $region13: #{tpu_custom_call.1} parent=11 // pred_check
          %p472 = pneg %p61
        $region14: #{tpu_custom_call.1} parent=11 // pred_check_branch
          %474 = sbr.rel (%p472) target = $region16
        $region15: #{tpu_custom_call.1} parent=11 // pred_region
          %p475 = scmp.lt.s32.totalorder %s32, 0
          %s476 = scalar_select %p475, %s32, 0
          %s477 = smul.addr %s476, 2
          %s478 = smul.addr %s477, 4
          %s479 = scalar_lea.vmem %s0, %s478
        $region16: #{tpu_custom_call.1} parent=11 // pred_fallthru
          _
        // Predicated region
        $region17: #{tpu_custom_call.1} parent=11 // pred_check
          %p480 = pneg %p82
        $region18: #{tpu_custom_call.1} parent=11 // pred_check_branch
          %482 = sbr.rel (%p480) target = $region20
        $region19: #{tpu_custom_call.1} parent=11 // pred_region
          _
        $region20: #{tpu_custom_call.1} parent=11 // pred_fallthru
          _
        // Predicated region
        $region21: #{tpu_custom_call.1} parent=11 // pred_check
          %p483 = pneg %p103
        $region22: #{tpu_custom_call.1} parent=11 // pred_check_branch
          %485 = sbr.rel (%p483) target = $region24
        $region23: #{tpu_custom_call.1} parent=11 // pred_region
          _
        $region24: #{tpu_custom_call.1} parent=11 // pred_fallthru
          _
        // Predicated region
        $region25: #{tpu_custom_call.1} parent=11 // pred_check
          %p486 = pneg %p124
        $region26: #{tpu_custom_call.1} parent=11 // pred_check_branch
          %488 = sbr.rel (%p486) target = $region28
        $region27: #{tpu_custom_call.1} parent=11 // pred_region
          _
        $region28: #{tpu_custom_call.1} parent=11 // pred_fallthru
          _
        // Predicated region
        $region29: #{tpu_custom_call.1} parent=11 // pred_check
          %p489 = pneg %p145
        $region30: #{tpu_custom_call.1} parent=11 // pred_check_branch
          %491 = sbr.rel (%p489) target = $region32
        $region31: #{tpu_custom_call.1} parent=11 // pred_region
          _
        $region32: #{tpu_custom_call.1} parent=11 // pred_fallthru
          _
      $region12: #{tpu_custom_call.1} parent=5 // pred_fallthru
        _
      %p492 = scmp.lt.s32.totalorder %s23, 2
      // Predicated region
      $region33: #{tpu_custom_call.1} parent=5 // pred_check
        %p493 = pneg %p492
      $region34: #{tpu_custom_call.1} parent=5 // pred_check_branch
        %495 = sbr.rel (%p493) target = $region36
      $region35: #{tpu_custom_call.1} parent=5 // pred_region
        // Predicated region
        $region37: #{tpu_custom_call.1} parent=35 // pred_check
          %p496 = pneg %p165
        $region38: #{tpu_custom_call.1} parent=35 // pred_check_branch
          %498 = sbr.rel (%p496) target = $region40
        $region39: #{tpu_custom_call.1} parent=35 // pred_region
          %p499 = scmp.lt.s32.totalorder %s31, 1
          %s500 = scalar_select %p499, %s31, 1
          %s501 = scalar_lea.vmem %s5, %s500
        $region40: #{tpu_custom_call.1} parent=35 // pred_fallthru
          _
        // Predicated region
        $region41: #{tpu_custom_call.1} parent=35 // pred_check
          %p502 = pneg %p191
        $region42: #{tpu_custom_call.1} parent=35 // pred_check_branch
          %504 = sbr.rel (%p502) target = $region44
        $region43: #{tpu_custom_call.1} parent=35 // pred_region
          %p505 = scmp.lt.s32.totalorder %s31, 1
          %s506 = scalar_select %p505, %s31, 1
          %s507 = scalar_lea.vmem %s6, %s506
        $region44: #{tpu_custom_call.1} parent=35 // pred_fallthru
          _
        // Predicated region
        $region45: #{tpu_custom_call.1} parent=35 // pred_check
          %p508 = pneg %p217
        $region46: #{tpu_custom_call.1} parent=35 // pred_check_branch
          %510 = sbr.rel (%p508) target = $region48
        $region47: #{tpu_custom_call.1} parent=35 // pred_region
          %p511 = scmp.lt.s32.totalorder %s31, 1
          %s512 = scalar_select %p511, %s31, 1
          %s513 = smul.addr %s512, 4
          %s514 = smul.addr %s513, 4
          %s515 = scalar_lea.vmem %s7, %s514
        $region48: #{tpu_custom_call.1} parent=35 // pred_fallthru
          _
        // Predicated region
        $region49: #{tpu_custom_call.1} parent=35 // pred_check
          %p516 = pneg %p243
        $region50: #{tpu_custom_call.1} parent=35 // pred_check_branch
          %518 = sbr.rel (%p516) target = $region52
        $region51: #{tpu_custom_call.1} parent=35 // pred_region
          %p519 = scmp.lt.s32.totalorder %s31, 1
          %s520 = scalar_select %p519, %s31, 1
          %s521 = smul.addr %s520, 2
          %s522 = smul.addr %s521, 4
          %s523 = scalar_lea.vmem %s8, %s522
        $region52: #{tpu_custom_call.1} parent=35 // pred_fallthru
          _
        // Predicated region
        $region53: #{tpu_custom_call.1} parent=35 // pred_check
          %p524 = pneg %p269
        $region54: #{tpu_custom_call.1} parent=35 // pred_check_branch
          %526 = sbr.rel (%p524) target = $region56
        $region55: #{tpu_custom_call.1} parent=35 // pred_region
          %p527 = scmp.lt.s32.totalorder %s31, 1
          %s528 = scalar_select %p527, %s31, 1
          %s529 = scalar_lea.vmem %s9, %s528
        $region56: #{tpu_custom_call.1} parent=35 // pred_fallthru
          _
        // Predicated region
        $region57: #{tpu_custom_call.1} parent=35 // pred_check
          %p530 = pneg %p295
        $region58: #{tpu_custom_call.1} parent=35 // pred_check_branch
          %532 = sbr.rel (%p530) target = $region60
        $region59: #{tpu_custom_call.1} parent=35 // pred_region
          %p533 = scmp.lt.s32.totalorder %s31, 1
          %s534 = scalar_select %p533, %s31, 1
          %s535 = scalar_lea.vmem %s10, %s534
        $region60: #{tpu_custom_call.1} parent=35 // pred_fallthru
          _
        // Predicated region
        $region61: #{tpu_custom_call.1} parent=35 // pred_check
          %p536 = pneg %p321
        $region62: #{tpu_custom_call.1} parent=35 // pred_check_branch
          %538 = sbr.rel (%p536) target = $region64
        $region63: #{tpu_custom_call.1} parent=35 // pred_region
          %p539 = scmp.lt.s32.totalorder %s31, 1
          %s540 = scalar_select %p539, %s31, 1
          %s541 = scalar_lea.vmem %s11, %s540
        $region64: #{tpu_custom_call.1} parent=35 // pred_fallthru
          _
        // Predicated region
        $region65: #{tpu_custom_call.1} parent=35 // pred_check
          %p542 = pneg %p347
        $region66: #{tpu_custom_call.1} parent=35 // pred_check_branch
          %544 = sbr.rel (%p542) target = $region68
        $region67: #{tpu_custom_call.1} parent=35 // pred_region
          %p545 = scmp.lt.s32.totalorder %s31, 1
          %s546 = scalar_select %p545, %s31, 1
          %s547 = smul.addr %s546, 4
          %s548 = smul.addr %s547, 4
          %s549 = scalar_lea.vmem %s12, %s548
        $region68: #{tpu_custom_call.1} parent=35 // pred_fallthru
          _
        // Predicated region
        $region69: #{tpu_custom_call.1} parent=35 // pred_check
          %p550 = pneg %p373
        $region70: #{tpu_custom_call.1} parent=35 // pred_check_branch
          %552 = sbr.rel (%p550) target = $region72
        $region71: #{tpu_custom_call.1} parent=35 // pred_region
          %p553 = scmp.lt.s32.totalorder %s31, 1
          %s554 = scalar_select %p553, %s31, 1
          %s555 = scalar_lea.vmem %s13, %s554
        $region72: #{tpu_custom_call.1} parent=35 // pred_fallthru
          _
        // Predicated region
        $region73: #{tpu_custom_call.1} parent=35 // pred_check
          %p556 = pneg %p399
        $region74: #{tpu_custom_call.1} parent=35 // pred_check_branch
          %558 = sbr.rel (%p556) target = $region76
        $region75: #{tpu_custom_call.1} parent=35 // pred_region
          %p559 = scmp.lt.s32.totalorder %s31, 1
          %s560 = scalar_select %p559, %s31, 1
          %s561 = smul.addr %s560, 8
          %s562 = smul.addr %s561, 4
          %s563 = scalar_lea.vmem %s14, %s562
        $region76: #{tpu_custom_call.1} parent=35 // pred_fallthru
          _
        // Predicated region
        $region77: #{tpu_custom_call.1} parent=35 // pred_check
          %p564 = pneg %p425
        $region78: #{tpu_custom_call.1} parent=35 // pred_check_branch
          %566 = sbr.rel (%p564) target = $region80
        $region79: #{tpu_custom_call.1} parent=35 // pred_region
          %p567 = scmp.lt.s32.totalorder %s31, 1
          %s568 = scalar_select %p567, %s31, 1
          %s569 = scalar_lea.vmem %s15, %s568
        $region80: #{tpu_custom_call.1} parent=35 // pred_fallthru
          _
      $region36: #{tpu_custom_call.1} parent=5 // pred_fallthru
        _
      %p570 = scmp.le.s32.totalorder 1, %s23
      %p571 = scmp.lt.s32.totalorder %s23, 3
      %p572 = pnand %p570, %p571
      %p573 = pneg %p572
      // Predicated region
      $region81: #{tpu_custom_call.1} parent=5 // pred_check
        _
      $region82: #{tpu_custom_call.1} parent=5 // pred_check_branch
        %575 = sbr.rel (%p572) target = $region84
      $region83: #{tpu_custom_call.1} parent=5 // pred_region
        %s576 = ssub.s32 %s23, 1
        %p577 = scmp.lt.s32.totalorder %s32, 0
        %s578 = scalar_select %p577, %s32, 0
        %s579 = smul.addr %s578, 2
        %s580 = smul.addr %s579, 4
        %s581 = scalar_lea.vmem %s0, %s580
        %p582 = pneg %p61
        %p583 = pneg %p58
        %p584 = pneg %p82
        %p585 = pneg %p79
        %p586 = pneg %p103
        %p587 = pneg %p100
        %p588 = pneg %p124
        %p589 = pneg %p121
        %p590 = pneg %p145
        %p591 = pneg %p142
        %p592 = scmp.lt.s32.totalorder %s33, 1
        %s593 = scalar_select %p592, %s33, 1
        %s594 = scalar_lea.vmem %s5, %s593
        %p595 = pneg %p171
        %p596 = pneg %p168
        %p597 = scmp.lt.s32.totalorder %s33, 1
        %s598 = scalar_select %p597, %s33, 1
        %s599 = scalar_lea.vmem %s6, %s598
        %p600 = pneg %p197
        %p601 = pneg %p194
        %p602 = scmp.lt.s32.totalorder %s33, 1
        %s603 = scalar_select %p602, %s33, 1
        %s604 = smul.addr %s603, 4
        %s605 = smul.addr %s604, 4
        %s606 = scalar_lea.vmem %s7, %s605
        %p607 = pneg %p223
        %p608 = pneg %p220
        %p609 = scmp.lt.s32.totalorder %s33, 1
        %s610 = scalar_select %p609, %s33, 1
        %s611 = smul.addr %s610, 2
        %s612 = smul.addr %s611, 4
        %s613 = scalar_lea.vmem %s8, %s612
        %p614 = pneg %p249
        %p615 = pneg %p246
        %p616 = scmp.lt.s32.totalorder %s33, 1
        %s617 = scalar_select %p616, %s33, 1
        %s618 = scalar_lea.vmem %s9, %s617
        %p619 = pneg %p275
        %p620 = pneg %p272
        %p621 = scmp.lt.s32.totalorder %s33, 1
        %s622 = scalar_select %p621, %s33, 1
        %s623 = scalar_lea.vmem %s10, %s622
        %p624 = pneg %p301
        %p625 = pneg %p298
        %p626 = scmp.lt.s32.totalorder %s33, 1
        %s627 = scalar_select %p626, %s33, 1
        %s628 = scalar_lea.vmem %s11, %s627
        %p629 = pneg %p327
        %p630 = pneg %p324
        %p631 = scmp.lt.s32.totalorder %s33, 1
        %s632 = scalar_select %p631, %s33, 1
        %s633 = smul.addr %s632, 4
        %s634 = smul.addr %s633, 4
        %s635 = scalar_lea.vmem %s12, %s634
        %p636 = pneg %p353
        %p637 = pneg %p350
        %p638 = scmp.lt.s32.totalorder %s33, 1
        %s639 = scalar_select %p638, %s33, 1
        %s640 = scalar_lea.vmem %s13, %s639
        %p641 = pneg %p379
        %p642 = pneg %p376
        %p643 = scmp.lt.s32.totalorder %s33, 1
        %s644 = scalar_select %p643, %s33, 1
        %s645 = smul.addr %s644, 8
        %s646 = smul.addr %s645, 4
        %s647 = scalar_lea.vmem %s14, %s646
        %p648 = pneg %p405
        %p649 = pneg %p402
        %p650 = scmp.lt.s32.totalorder %s33, 1
        %s651 = scalar_select %p650, %s33, 1
        %s652 = scalar_lea.vmem %s15, %s651
        %p653 = pneg %p431
        %p654 = pneg %p428
        %p655 = pneg %p457
        %p656 = pneg %p454
        %p657 = scmp.lt.s32.totalorder %s32, 0
        %s658 = scalar_select %p657, %s32, 0
        %s659 = smul.addr %s658, 2
        %s660 = smul.addr %s659, 4
        %s661 = scalar_lea.vmem %s0, %s660
        %p662 = scmp.lt.s32.totalorder %s33, 1
        %s663 = scalar_select %p662, %s33, 1
        %s664 = scalar_lea.vmem %s5, %s663
        %p665 = scmp.lt.s32.totalorder %s33, 1
        %s666 = scalar_select %p665, %s33, 1
        %s667 = scalar_lea.vmem %s6, %s666
        %p668 = scmp.lt.s32.totalorder %s33, 1
        %s669 = scalar_select %p668, %s33, 1
        %s670 = smul.addr %s669, 4
        %s671 = smul.addr %s670, 4
        %s672 = scalar_lea.vmem %s7, %s671
        %p673 = scmp.lt.s32.totalorder %s33, 1
        %s674 = scalar_select %p673, %s33, 1
        %s675 = smul.addr %s674, 2
        %s676 = smul.addr %s675, 4
        %s677 = scalar_lea.vmem %s8, %s676
        %p678 = scmp.lt.s32.totalorder %s33, 1
        %s679 = scalar_select %p678, %s33, 1
        %s680 = scalar_lea.vmem %s9, %s679
        %p681 = scmp.lt.s32.totalorder %s33, 1
        %s682 = scalar_select %p681, %s33, 1
        %s683 = scalar_lea.vmem %s10, %s682
        %p684 = scmp.lt.s32.totalorder %s33, 1
        %s685 = scalar_select %p684, %s33, 1
        %s686 = scalar_lea.vmem %s11, %s685
        %p687 = scmp.lt.s32.totalorder %s33, 1
        %s688 = scalar_select %p687, %s33, 1
        %s689 = smul.addr %s688, 4
        %s690 = smul.addr %s689, 4
        %s691 = scalar_lea.vmem %s12, %s690
        %p692 = scmp.lt.s32.totalorder %s33, 1
        %s693 = scalar_select %p692, %s33, 1
        %s694 = scalar_lea.vmem %s13, %s693
        %p695 = scmp.lt.s32.totalorder %s33, 1
        %s696 = scalar_select %p695, %s33, 1
        %s697 = smul.addr %s696, 8
        %s698 = smul.addr %s697, 4
        %s699 = scalar_lea.vmem %s14, %s698
        %p700 = scmp.lt.s32.totalorder %s33, 1
        %s701 = scalar_select %p700, %s33, 1
        %s702 = scalar_lea.vmem %s15, %s701
        %s703 = smul.u32 2, %s32
        %p705 = scmp.eq.s32.totalorder %s33, 0
        // Predicated region
        $region85: #{tpu_custom_call.1} parent=83 // pred_check
          %p706 = pneg %p705
        $region86: #{tpu_custom_call.1} parent=83 // pred_check_branch
          %708 = sbr.rel (%p706) target = $region88
        $region87: #{tpu_custom_call.1} parent=83 // pred_region
          %v709 = vld [vmem:[%s661] sm:$0xff]
          %v710 = vld [vmem:[%s1] sm:$0xf]
          %v711 = vld [vmem:[%s1 + $0x4] sm:$0xf]
          %v712 = vld [vmem:[%s1 + $0x8] sm:$0xf]
          %v713 = vld [vmem:[%s1 + $0xc] sm:$0xf]
          %v714 = vld [vmem:[%s1 + $0x10] sm:$0xf]
          %v715 = vld [vmem:[%s1 + $0x14] sm:$0xf]
          %v716 = vld [vmem:[%s1 + $0x18] sm:$0xf]
          %v717 = vld [vmem:[%s1 + $0x1c] sm:$0xf]
          %v718 = vld [vmem:[%s1 + $0x20] sm:$0xf]
          %v719 = vld [vmem:[%s1 + $0x24] sm:$0xf]
          %v720 = vld [vmem:[%s1 + $0x28] sm:$0xf]
          %v721 = vld [vmem:[%s1 + $0x2c] sm:$0xf]
          %v722 = vld [vmem:[%s1 + $0x30] sm:$0xf]
          %v723 = vld [vmem:[%s1 + $0x34] sm:$0xf]
          %v724 = vld [vmem:[%s1 + $0x38] sm:$0xf]
          %v725 = vld [vmem:[%s1 + $0x3c] sm:$0xf]
          %v726 = vld [vmem:[%s1 + $0x40] sm:$0xf]
          %v727 = vld [vmem:[%s1 + $0x44] sm:$0xf]
          %v728 = vld [vmem:[%s1 + $0x48] sm:$0xf]
          %v729 = vld [vmem:[%s1 + $0x4c] sm:$0xf]
          %v730 = vld [vmem:[%s1 + $0x50] sm:$0xf]
          %v731 = vld [vmem:[%s1 + $0x54] sm:$0xf]
          %v732 = vld [vmem:[%s1 + $0x58] sm:$0xf]
          %v733 = vld [vmem:[%s1 + $0x5c] sm:$0xf]
          %v734 = vld [vmem:[%s2] sm:$0x1]
          %v736 = vlaneseq
          %v737 = vshrl.u32 %v736, 7
          %v738 = vsub.s32 0, %v737
          %v739 = vrot.slane %v734, %v738
          %v742 = vunpack.c.l.b16 %v709
          %v743 = vunpack.c.h.b16 %v709
          %v744 = vpack.c.b16 %v742, %v742
          %v745 = vpack.c.b16 %v743, %v743
          %v771 = vunpack.c.l.b16 %v710
          %v772 = vunpack.c.l.b16 %v711
          %v773 = vunpack.c.l.b16 %v712
          %v774 = vunpack.c.l.b16 %v713
          %v775 = vunpack.c.l.b16 %v714
          %v776 = vunpack.c.l.b16 %v715
          %v777 = vunpack.c.l.b16 %v716
          %v778 = vunpack.c.l.b16 %v717
          %v779 = vunpack.c.l.b16 %v718
          %v780 = vunpack.c.l.b16 %v719
          %v781 = vunpack.c.l.b16 %v720
          %v782 = vunpack.c.l.b16 %v721
          %v783 = vunpack.c.l.b16 %v722
          %v784 = vunpack.c.l.b16 %v723
          %v785 = vunpack.c.l.b16 %v724
          %v786 = vunpack.c.l.b16 %v725
          %v787 = vunpack.c.l.b16 %v726
          %v788 = vunpack.c.l.b16 %v727
          %v789 = vunpack.c.l.b16 %v728
          %v790 = vunpack.c.l.b16 %v729
          %v791 = vunpack.c.l.b16 %v730
          %v792 = vunpack.c.l.b16 %v731
          %v793 = vunpack.c.l.b16 %v732
          %v794 = vunpack.c.l.b16 %v733
          %v795 = vpack.c.b16 %v772, %v771
          %v796 = vpack.c.b16 %v774, %v773
          %v797 = vpack.c.b16 %v776, %v775
          %v798 = vpack.c.b16 %v778, %v777
          %v799 = vpack.c.b16 %v780, %v779
          %v800 = vpack.c.b16 %v782, %v781
          %v801 = vpack.c.b16 %v784, %v783
          %v802 = vpack.c.b16 %v786, %v785
          %v803 = vpack.c.b16 %v788, %v787
          %v804 = vpack.c.b16 %v790, %v789
          %v805 = vpack.c.b16 %v792, %v791
          %v806 = vpack.c.b16 %v794, %v793
          %vm819 = vcmask 523264
          %v821 = vsel %vm819, %v745, 0
          %823 = vmatprep.subr.bf16.mxu0 0
          %824 = vmatpush1.bf16.msra.mxu0 %v795
          %825 = vmatprep.subr.bf16.mxu0 0
          %826 = vmatpush1.bf16.msra.mxu0 %v796
          %827 = vmatprep.subr.bf16.mxu0 0
          %828 = vmatpush1.bf16.msra.mxu0 %v797
          %829 = vmatprep.subr.bf16.mxu0 0
          %830 = vmatpush1.bf16.msra.mxu0 %v798
          %831 = vmatprep.subr.bf16.mxu0 0
          %832 = vmatpush1.bf16.msra.mxu0 %v799
          %833 = vmatprep.subr.bf16.mxu0 0
          %834 = vmatpush1.bf16.msra.mxu0 %v800
          %835 = vmatprep.subr.bf16.mxu0 0
          %836 = vmatpush1.bf16.msra.mxu0 %v801
          %837 = vmatprep.subr.bf16.mxu0 0
          %838 = vmatpush1.bf16.msra.mxu0 %v802
          %839 = vmatprep.subr.bf16.mxu0 0
          %840 = vmatpush1.bf16.msra.mxu0 %v803
          %841 = vmatprep.subr.bf16.mxu0 0
          %842 = vmatpush1.bf16.msra.mxu0 %v804
          %843 = vmatprep.subr.bf16.mxu0 0
          %844 = vmatpush1.bf16.msra.mxu0 %v805
          %845 = vmatprep.subr.bf16.mxu0 0
          %846 = vmatpush1.bf16.msra.mxu0 %v806
          %847 = vmatprep.subr.bf16.mxu0 0
          %848 = vmatpush1.bf16.msra.mxu0 0
          %849 = vmatprep.subr.bf16.mxu0 0
          %850 = vmatpush1.bf16.msra.mxu0 0
          %851 = vmatprep.subr.bf16.mxu0 0
          %852 = vmatpush1.bf16.msra.mxu0 0
          %853 = vmatprep.subr.bf16.mxu0 0
          %854 = vmatpush1.bf16.msra.mxu0 0
          %855 = vmatprep.mubr.bf16.mxu0 %v821
          %856 = vmatmul.mubr.bf16.gmra.mrb[0].mxu0 %v744
          %v857 = vpop.f32.mrb[0].mxu0
          %v858 = vadd.f32 %v739, %v857
          %v859 = vpop.f32.mrb[0].mxu0
          %v860 = vpop.f32.mrb[0].mxu0
          %v861 = vpop.f32.mrb[0].mxu0
          %862 = vdwg.mxu0
          %v863 = vld [vmem:[%s3] sm:$0x1]
          %v864 = vld [vmem:[%s4] sm:$0x1]
          %v865 = vadd.f32 %v863, %v864
          %v866 = vld [vmem:[%s4 + $0x1] sm:$0xf]
          %vm867 = vcmask 253952
          %868 = vst.msk [vmem:[#allocation2] sm:$0x1] %vm867, %v865
          %v869 = vadd.f32 %v858, %v866
          %vm870 = vcmask 257024
          %871 = vst.msk [vmem:[#allocation2 + $0x1] sm:$0xf] %vm870, %v869
          %vm872 = vcmask 256000
          %873 = vst.msk [vmem:[#allocation2 + $0x5] sm:$0x7] %vm872, 0.0
          %s874 = scalar_lea.vmem [#allocation2], 8
          %875 = vst.msk [vmem:[%s874] sm:$0x1] %vm867, %v865
          %v877 = vrot.slane %v866, 4
          %v879 = vadd.f32 %v858, %v877
          %vm880 = vcmask 261124
          %881 = vst.msk [vmem:[%s874 - $0x3] sm:$0xf0] %vm880, %v879
          %882 = vst.msk [vmem:[%s874 + $0x5] sm:$0x7] %vm872, 0.0
        $region88: #{tpu_custom_call.1} parent=83 // pred_fallthru
          _
        %v883 = vld [vmem:[#allocation2] sm:$0xff]
        %v884 = vld [vmem:[#allocation2 + $0x8] sm:$0xff]
        %v885 = vld [vmem:[%s664] sm:$0x1]
        %v886 = vld [vmem:[%s667] sm:$0x1]
        %vm887 = vcmask 261120
        %v888 = vsel %vm887, %v883, 0.0
        %889 = vadd.xlane.f32.xlu0 %v888
        %v890 = vpop.xlane.xlu0 %889
        %v891 = vsel %vm887, %v884, 0.0
        %892 = vadd.xlane.f32.xlu0 %v891
        %v893 = vpop.xlane.xlu0 %892
        %v894 = vrcp.pop 32.0
        %v895 = vmul.f32 %v890, %v894
        %v896 = vmul.f32 %v893, %v894
        %v897 = vsub.f32 %v883, %v895
        %v898 = vsub.f32 %v884, %v896
        %v899 = vmul.f32 %v897, %v897
        %v900 = vmul.f32 %v898, %v898
        %v901 = vsel %vm887, %v899, 0.0
        %902 = vadd.xlane.f32.xlu0 %v901
        %v903 = vpop.xlane.xlu0 %902
        %v904 = vsel %vm887, %v900, 0.0
        %905 = vadd.xlane.f32.xlu0 %v904
        %v906 = vpop.xlane.xlu0 %905
        %v907 = vmul.f32 %v903, %v894
        %v908 = vmul.f32 %v906, %v894
        %v909 = vadd.f32 %v907, 1e-05
        %v910 = vadd.f32 %v908, 1e-05
        %v911 = vrsqrt.pop %v909
        %v912 = vrsqrt.pop %v910
        %v913 = vmul.f32 %v897, %v911
        %v914 = vmul.f32 %v898, %v912
        %v916 = vlaneseq
        %v917 = vshrl.u32 %v916, 7
        %v918 = vsub.s32 0, %v917
        %v919 = vrot.slane %v885, %v918
        %v921 = vmul.f32 %v913, %v919
        %v922 = vmul.f32 %v914, %v919
        %v924 = vlaneseq
        %v925 = vshrl.u32 %v924, 7
        %v926 = vsub.s32 0, %v925
        %v927 = vrot.slane %v886, %v926
        %v929 = vadd.f32 %v921, %v927
        %v930 = vadd.f32 %v922, %v927
        %v931 = vpack.c.bf16 %v930, %v929
        %v932 = vld [vmem:[%s672] sm:$0xf]
        %v933 = vld [vmem:[%s672 + $0x4] sm:$0xf]
        %v934 = vld [vmem:[%s672 + $0x8] sm:$0xf]
        %v935 = vld [vmem:[%s672 + $0xc] sm:$0xf]
        %v940 = vunpack.c.l.b16 %v932
        %v941 = vunpack.c.l.b16 %v933
        %v942 = vunpack.c.l.b16 %v934
        %v943 = vunpack.c.l.b16 %v935
        %v944 = vpack.c.b16 %v941, %v940
        %v945 = vpack.c.b16 %v943, %v942
        %v949 = vsel %vm887, %v931, 0
        %951 = vmatprep.subr.bf16.mxu0 0
        %952 = vmatpush1.bf16.msra.mxu0 %v944
        %953 = vmatprep.subr.bf16.mxu0 0
        %954 = vmatpush1.bf16.msra.mxu0 %v945
        %955 = vmatprep.subr.bf16.mxu0 0
        %956 = vmatpush1.bf16.msra.mxu0 0
        %957 = vmatprep.subr.bf16.mxu0 0
        %958 = vmatpush1.bf16.msra.mxu0 0
        %959 = vmatprep.subr.bf16.mxu0 0
        %960 = vmatpush1.bf16.msra.mxu0 0
        %961 = vmatprep.subr.bf16.mxu0 0
        %962 = vmatpush1.bf16.msra.mxu0 0
        %963 = vmatprep.subr.bf16.mxu0 0
        %964 = vmatpush1.bf16.msra.mxu0 0
        %965 = vmatprep.subr.bf16.mxu0 0
        %966 = vmatpush1.bf16.msra.mxu0 0
        %967 = vmatprep.subr.bf16.mxu0 0
        %968 = vmatpush1.bf16.msra.mxu0 0
        %969 = vmatprep.subr.bf16.mxu0 0
        %970 = vmatpush1.bf16.msra.mxu0 0
        %971 = vmatprep.subr.bf16.mxu0 0
        %972 = vmatpush1.bf16.msra.mxu0 0
        %973 = vmatprep.subr.bf16.mxu0 0
        %974 = vmatpush1.bf16.msra.mxu0 0
        %975 = vmatprep.subr.bf16.mxu0 0
        %976 = vmatpush1.bf16.msra.mxu0 0
        %977 = vmatprep.subr.bf16.mxu0 0
        %978 = vmatpush1.bf16.msra.mxu0 0
        %979 = vmatprep.subr.bf16.mxu0 0
        %980 = vmatpush1.bf16.msra.mxu0 0
        %981 = vmatprep.subr.bf16.mxu0 0
        %982 = vmatpush1.bf16.msra.mxu0 0
        %983 = vmatprep.mubr.bf16.mxu0 0
        %984 = vmatmul.mubr.bf16.gmra.mrb[0].mxu0 %v949
        %v985 = vpop.f32.mrb[0].mxu0
        %v986 = vadd.f32 0.0, %v985
        %v987 = vpop.f32.mrb[0].mxu0
        %v988 = vpop.f32.mrb[0].mxu0
        %v989 = vadd.f32 0.0, %v988
        %v990 = vpop.f32.mrb[0].mxu0
        %991 = vdwg.mxu0
        %v992 = vlaneseq
        %v993 = vand.u32 %v992, 127
        %vm994 = vcmp.lt.s32.totalorder %v993, 5
        %v995 = vsel %vm994, 0.0, -1e+30
        %997 = vrot.lane.b32.xlu0 %v986, 112
        %v998 = vpop.permute.xlu0 %997
        %vm999 = vcmask 64512
        %v1000 = vsel %vm999, %v986, 0
        %v1002 = vsel %vm999, %v998, 0
        %1004 = vmatprep.subr.mxu0 0.0
        %1005 = vmatpush1.xpose.msra.mxu0 %v1002
        %1006 = vmatprep.subr.mxu0 0.0
        %1007 = vmatpush1.xpose.msra.mxu0 0.0
        %1008 = vmatprep.subr.mxu0 0.0
        %1009 = vmatpush1.xpose.msra.mxu0 0.0
        %1010 = vmatprep.subr.mxu0 0.0
        %1011 = vmatpush1.xpose.msra.mxu0 0.0
        %1012 = vmatprep.subr.mxu0 0.0
        %1013 = vmatpush1.xpose.msra.mxu0 0.0
        %1014 = vmatprep.subr.mxu0 0.0
        %1015 = vmatpush1.xpose.msra.mxu0 0.0
        %1016 = vmatprep.subr.mxu0 0.0
        %1017 = vmatpush1.xpose.msra.mxu0 0.0
        %1018 = vmatprep.subr.mxu0 0.0
        %1019 = vmatpush1.xpose.msra.mxu0 0.0
        %1020 = vmatprep.subr.mxu0 0.0
        %1021 = vmatpush1.xpose.msra.mxu0 0.0
        %1022 = vmatprep.subr.mxu0 0.0
        %1023 = vmatpush1.xpose.msra.mxu0 0.0
        %1024 = vmatprep.subr.mxu0 0.0
        %1025 = vmatpush1.xpose.msra.mxu0 0.0
        %1026 = vmatprep.subr.mxu0 0.0
        %1027 = vmatpush1.xpose.msra.mxu0 0.0
        %1028 = vmatprep.subr.mxu0 0.0
        %1029 = vmatpush1.xpose.msra.mxu0 0.0
        %1030 = vmatprep.subr.mxu0 0.0
        %1031 = vmatpush1.xpose.msra.mxu0 0.0
        %1032 = vmatprep.subr.mxu0 0.0
        %1033 = vmatpush1.xpose.msra.mxu0 0.0
        %1034 = vmatprep.subr.mxu0 0.0
        %1035 = vmatpush1.xpose.msra.mxu0 0.0
        %1036 = vmatprep.subr.mxu0 0.0
        %1037 = vmatpush1.xpose.msra.mxu0 0.0
        %1038 = vmatprep.subr.mxu0 0.0
        %1039 = vmatpush1.xpose.msra.mxu0 0.0
        %1040 = vmatprep.subr.mxu0 0.0
        %1041 = vmatpush1.xpose.msra.mxu0 0.0
        %1042 = vmatprep.subr.mxu0 0.0
        %1043 = vmatpush1.xpose.msra.mxu0 0.0
        %1044 = vmatprep.subr.mxu0 0.0
        %1045 = vmatpush1.xpose.msra.mxu0 0.0
        %1046 = vmatprep.subr.mxu0 0.0
        %1047 = vmatpush1.xpose.msra.mxu0 0.0
        %1048 = vmatprep.subr.mxu0 0.0
        %1049 = vmatpush1.xpose.msra.mxu0 0.0
        %1050 = vmatprep.subr.mxu0 0.0
        %1051 = vmatpush1.xpose.msra.mxu0 0.0
        %1052 = vmatprep.subr.mxu0 0.0
        %1053 = vmatpush1.xpose.msra.mxu0 0.0
        %1054 = vmatprep.subr.mxu0 0.0
        %1055 = vmatpush1.xpose.msra.mxu0 0.0
        %1056 = vmatprep.subr.mxu0 0.0
        %1057 = vmatpush1.xpose.msra.mxu0 0.0
        %1058 = vmatprep.subr.mxu0 0.0
        %1059 = vmatpush1.xpose.msra.mxu0 0.0
        %1060 = vmatprep.subr.mxu0 0.0
        %1061 = vmatpush1.xpose.msra.mxu0 0.0
        %1062 = vmatprep.subr.mxu0 0.0
        %1063 = vmatpush1.xpose.msra.mxu0 0.0
        %1064 = vmatprep.subr.mxu0 0.0
        %1065 = vmatpush1.xpose.msra.mxu0 0.0
        %1066 = vmatprep.subr.mxu0 0.0
        %1067 = vmatpush1.xpose.msra.mxu0 0.0
        %1068 = vmatprep.mubr.f32.mxu0 0.0
        %1069 = vmatmul.mubr.f32.gmra.mrb[0].mxu0 %v1000
        %v1070 = vpop.f32.mrb[0].mxu0
        %v1071 = vadd.f32 %v995, %v1070
        %v1072 = vpop.f32.mrb[0].mxu0
        %1073 = vdwg.mxu0
        %1075 = vrot.lane.b32.xlu0 %v989, 112
        %v1076 = vpop.permute.xlu0 %1075
        %v1077 = vsel %vm999, %v989, 0
        %v1079 = vsel %vm999, %v1076, 0
        %1081 = vmatprep.subr.mxu0 0.0
        %1082 = vmatpush1.xpose.msra.mxu0 %v1079
        %1083 = vmatprep.subr.mxu0 0.0
        %1084 = vmatpush1.xpose.msra.mxu0 0.0
        %1085 = vmatprep.subr.mxu0 0.0
        %1086 = vmatpush1.xpose.msra.mxu0 0.0
        %1087 = vmatprep.subr.mxu0 0.0
        %1088 = vmatpush1.xpose.msra.mxu0 0.0
        %1089 = vmatprep.subr.mxu0 0.0
        %1090 = vmatpush1.xpose.msra.mxu0 0.0
        %1091 = vmatprep.subr.mxu0 0.0
        %1092 = vmatpush1.xpose.msra.mxu0 0.0
        %1093 = vmatprep.subr.mxu0 0.0
        %1094 = vmatpush1.xpose.msra.mxu0 0.0
        %1095 = vmatprep.subr.mxu0 0.0
        %1096 = vmatpush1.xpose.msra.mxu0 0.0
        %1097 = vmatprep.subr.mxu0 0.0
        %1098 = vmatpush1.xpose.msra.mxu0 0.0
        %1099 = vmatprep.subr.mxu0 0.0
        %1100 = vmatpush1.xpose.msra.mxu0 0.0
        %1101 = vmatprep.subr.mxu0 0.0
        %1102 = vmatpush1.xpose.msra.mxu0 0.0
        %1103 = vmatprep.subr.mxu0 0.0
        %1104 = vmatpush1.xpose.msra.mxu0 0.0
        %1105 = vmatprep.subr.mxu0 0.0
        %1106 = vmatpush1.xpose.msra.mxu0 0.0
        %1107 = vmatprep.subr.mxu0 0.0
        %1108 = vmatpush1.xpose.msra.mxu0 0.0
        %1109 = vmatprep.subr.mxu0 0.0
        %1110 = vmatpush1.xpose.msra.mxu0 0.0
        %1111 = vmatprep.subr.mxu0 0.0
        %1112 = vmatpush1.xpose.msra.mxu0 0.0
        %1113 = vmatprep.subr.mxu0 0.0
        %1114 = vmatpush1.xpose.msra.mxu0 0.0
        %1115 = vmatprep.subr.mxu0 0.0
        %1116 = vmatpush1.xpose.msra.mxu0 0.0
        %1117 = vmatprep.subr.mxu0 0.0
        %1118 = vmatpush1.xpose.msra.mxu0 0.0
        %1119 = vmatprep.subr.mxu0 0.0
        %1120 = vmatpush1.xpose.msra.mxu0 0.0
        %1121 = vmatprep.subr.mxu0 0.0
        %1122 = vmatpush1.xpose.msra.mxu0 0.0
        %1123 = vmatprep.subr.mxu0 0.0
        %1124 = vmatpush1.xpose.msra.mxu0 0.0
        %1125 = vmatprep.subr.mxu0 0.0
        %1126 = vmatpush1.xpose.msra.mxu0 0.0
        %1127 = vmatprep.subr.mxu0 0.0
        %1128 = vmatpush1.xpose.msra.mxu0 0.0
        %1129 = vmatprep.subr.mxu0 0.0
        %1130 = vmatpush1.xpose.msra.mxu0 0.0
        %1131 = vmatprep.subr.mxu0 0.0
        %1132 = vmatpush1.xpose.msra.mxu0 0.0
        %1133 = vmatprep.subr.mxu0 0.0
        %1134 = vmatpush1.xpose.msra.mxu0 0.0
        %1135 = vmatprep.subr.mxu0 0.0
        %1136 = vmatpush1.xpose.msra.mxu0 0.0
        %1137 = vmatprep.subr.mxu0 0.0
        %1138 = vmatpush1.xpose.msra.mxu0 0.0
        %1139 = vmatprep.subr.mxu0 0.0
        %1140 = vmatpush1.xpose.msra.mxu0 0.0
        %1141 = vmatprep.subr.mxu0 0.0
        %1142 = vmatpush1.xpose.msra.mxu0 0.0
        %1143 = vmatprep.subr.mxu0 0.0
        %1144 = vmatpush1.xpose.msra.mxu0 0.0
        %1145 = vmatprep.mubr.f32.mxu0 0.0
        %1146 = vmatmul.mubr.f32.gmra.mrb[0].mxu0 %v1077
        %v1147 = vpop.f32.mrb[0].mxu0
        %v1148 = vadd.f32 %v995, %v1147
        %v1149 = vpop.f32.mrb[0].mxu0
        %1150 = vdwg.mxu0
        %v1151 = vsel %vm999, %v1071, -inf
        %1152 = vmax.xlane.f32.xlu0 %v1151
        %v1153 = vpop.xlane.xlu0 %1152
        %v1154 = vsel %vm999, %v1148, -inf
        %1155 = vmax.xlane.f32.xlu0 %v1154
        %v1156 = vpop.xlane.xlu0 %1155
        %v1157 = vsub.f32 %v1071, %v1153
        %v1158 = vsub.f32 %v1148, %v1156
        %v1159 = vmul.f32 %v1157, 1.442695
        %v1160 = vpow.pop %v1159
        %v1161 = vmul.f32 %v1158, 1.442695
        %v1162 = vpow.pop %v1161
        %v1163 = vsel %vm999, %v1160, 0.0
        %1164 = vadd.xlane.f32.xlu0 %v1163
        %v1165 = vpop.xlane.xlu0 %1164
        %v1166 = vsel %vm999, %v1162, 0.0
        %1167 = vadd.xlane.f32.xlu0 %v1166
        %v1168 = vpop.xlane.xlu0 %1167
        %v1169 = vrcp.pop %v1165
        %v1170 = vrcp.pop %v1168
        %v1171 = vmul.f32 %v1160, %v1169
        %v1172 = vmul.f32 %v1162, %v1170
        %1173 = vrot.lane.b32.xlu0 %v986, 96
        %v1174 = vpop.permute.xlu0 %1173
        %v1177 = vsel %vm999, %v1171, 0
        %1179 = vmatprep.subr.mxu0 0.0
        %1180 = vmatpush1.msra.mxu0 %v1174
        %1181 = vmatprep.subr.mxu0 0.0
        %1182 = vmatpush1.msra.mxu0 0.0
        %1183 = vmatprep.subr.mxu0 0.0
        %1184 = vmatpush1.msra.mxu0 0.0
        %1185 = vmatprep.subr.mxu0 0.0
        %1186 = vmatpush1.msra.mxu0 0.0
        %1187 = vmatprep.subr.mxu0 0.0
        %1188 = vmatpush1.msra.mxu0 0.0
        %1189 = vmatprep.subr.mxu0 0.0
        %1190 = vmatpush1.msra.mxu0 0.0
        %1191 = vmatprep.subr.mxu0 0.0
        %1192 = vmatpush1.msra.mxu0 0.0
        %1193 = vmatprep.subr.mxu0 0.0
        %1194 = vmatpush1.msra.mxu0 0.0
        %1195 = vmatprep.subr.mxu0 0.0
        %1196 = vmatpush1.msra.mxu0 0.0
        %1197 = vmatprep.subr.mxu0 0.0
        %1198 = vmatpush1.msra.mxu0 0.0
        %1199 = vmatprep.subr.mxu0 0.0
        %1200 = vmatpush1.msra.mxu0 0.0
        %1201 = vmatprep.subr.mxu0 0.0
        %1202 = vmatpush1.msra.mxu0 0.0
        %1203 = vmatprep.subr.mxu0 0.0
        %1204 = vmatpush1.msra.mxu0 0.0
        %1205 = vmatprep.subr.mxu0 0.0
        %1206 = vmatpush1.msra.mxu0 0.0
        %1207 = vmatprep.subr.mxu0 0.0
        %1208 = vmatpush1.msra.mxu0 0.0
        %1209 = vmatprep.subr.mxu0 0.0
        %1210 = vmatpush1.msra.mxu0 0.0
        %1211 = vmatprep.subr.mxu0 0.0
        %1212 = vmatpush1.msra.mxu0 0.0
        %1213 = vmatprep.subr.mxu0 0.0
        %1214 = vmatpush1.msra.mxu0 0.0
        %1215 = vmatprep.subr.mxu0 0.0
        %1216 = vmatpush1.msra.mxu0 0.0
        %1217 = vmatprep.subr.mxu0 0.0
        %1218 = vmatpush1.msra.mxu0 0.0
        %1219 = vmatprep.subr.mxu0 0.0
        %1220 = vmatpush1.msra.mxu0 0.0
        %1221 = vmatprep.subr.mxu0 0.0
        %1222 = vmatpush1.msra.mxu0 0.0
        %1223 = vmatprep.subr.mxu0 0.0
        %1224 = vmatpush1.msra.mxu0 0.0
        %1225 = vmatprep.subr.mxu0 0.0
        %1226 = vmatpush1.msra.mxu0 0.0
        %1227 = vmatprep.subr.mxu0 0.0
        %1228 = vmatpush1.msra.mxu0 0.0
        %1229 = vmatprep.subr.mxu0 0.0
        %1230 = vmatpush1.msra.mxu0 0.0
        %1231 = vmatprep.subr.mxu0 0.0
        %1232 = vmatpush1.msra.mxu0 0.0
        %1233 = vmatprep.subr.mxu0 0.0
        %1234 = vmatpush1.msra.mxu0 0.0
        %1235 = vmatprep.subr.mxu0 0.0
        %1236 = vmatpush1.msra.mxu0 0.0
        %1237 = vmatprep.subr.mxu0 0.0
        %1238 = vmatpush1.msra.mxu0 0.0
        %1239 = vmatprep.subr.mxu0 0.0
        %1240 = vmatpush1.msra.mxu0 0.0
        %1241 = vmatprep.subr.mxu0 0.0
        %1242 = vmatpush1.msra.mxu0 0.0
        %1243 = vmatprep.mubr.f32.mxu0 0.0
        %1244 = vmatmul.mubr.f32.gmra.mrb[0].mxu0 %v1177
        %v1245 = vpop.f32.mrb[0].mxu0
        %v1246 = vadd.f32 0.0, %v1245
        %v1247 = vpop.f32.mrb[0].mxu0
        %1248 = vdwg.mxu0
        %1249 = vrot.lane.b32.xlu0 %v989, 96
        %v1250 = vpop.permute.xlu0 %1249
        %v1253 = vsel %vm999, %v1172, 0
        %1255 = vmatprep.subr.mxu0 0.0
        %1256 = vmatpush1.msra.mxu0 %v1250
        %1257 = vmatprep.subr.mxu0 0.0
        %1258 = vmatpush1.msra.mxu0 0.0
        %1259 = vmatprep.subr.mxu0 0.0
        %1260 = vmatpush1.msra.mxu0 0.0
        %1261 = vmatprep.subr.mxu0 0.0
        %1262 = vmatpush1.msra.mxu0 0.0
        %1263 = vmatprep.subr.mxu0 0.0
        %1264 = vmatpush1.msra.mxu0 0.0
        %1265 = vmatprep.subr.mxu0 0.0
        %1266 = vmatpush1.msra.mxu0 0.0
        %1267 = vmatprep.subr.mxu0 0.0
        %1268 = vmatpush1.msra.mxu0 0.0
        %1269 = vmatprep.subr.mxu0 0.0
        %1270 = vmatpush1.msra.mxu0 0.0
        %1271 = vmatprep.subr.mxu0 0.0
        %1272 = vmatpush1.msra.mxu0 0.0
        %1273 = vmatprep.subr.mxu0 0.0
        %1274 = vmatpush1.msra.mxu0 0.0
        %1275 = vmatprep.subr.mxu0 0.0
        %1276 = vmatpush1.msra.mxu0 0.0
        %1277 = vmatprep.subr.mxu0 0.0
        %1278 = vmatpush1.msra.mxu0 0.0
        %1279 = vmatprep.subr.mxu0 0.0
        %1280 = vmatpush1.msra.mxu0 0.0
        %1281 = vmatprep.subr.mxu0 0.0
        %1282 = vmatpush1.msra.mxu0 0.0
        %1283 = vmatprep.subr.mxu0 0.0
        %1284 = vmatpush1.msra.mxu0 0.0
        %1285 = vmatprep.subr.mxu0 0.0
        %1286 = vmatpush1.msra.mxu0 0.0
        %1287 = vmatprep.subr.mxu0 0.0
        %1288 = vmatpush1.msra.mxu0 0.0
        %1289 = vmatprep.subr.mxu0 0.0
        %1290 = vmatpush1.msra.mxu0 0.0
        %1291 = vmatprep.subr.mxu0 0.0
        %1292 = vmatpush1.msra.mxu0 0.0
        %1293 = vmatprep.subr.mxu0 0.0
        %1294 = vmatpush1.msra.mxu0 0.0
        %1295 = vmatprep.subr.mxu0 0.0
        %1296 = vmatpush1.msra.mxu0 0.0
        %1297 = vmatprep.subr.mxu0 0.0
        %1298 = vmatpush1.msra.mxu0 0.0
        %1299 = vmatprep.subr.mxu0 0.0
        %1300 = vmatpush1.msra.mxu0 0.0
        %1301 = vmatprep.subr.mxu0 0.0
        %1302 = vmatpush1.msra.mxu0 0.0
        %1303 = vmatprep.subr.mxu0 0.0
        %1304 = vmatpush1.msra.mxu0 0.0
        %1305 = vmatprep.subr.mxu0 0.0
        %1306 = vmatpush1.msra.mxu0 0.0
        %1307 = vmatprep.subr.mxu0 0.0
        %1308 = vmatpush1.msra.mxu0 0.0
        %1309 = vmatprep.subr.mxu0 0.0
        %1310 = vmatpush1.msra.mxu0 0.0
        %1311 = vmatprep.subr.mxu0 0.0
        %1312 = vmatpush1.msra.mxu0 0.0
        %1313 = vmatprep.subr.mxu0 0.0
        %1314 = vmatpush1.msra.mxu0 0.0
        %1315 = vmatprep.subr.mxu0 0.0
        %1316 = vmatpush1.msra.mxu0 0.0
        %1317 = vmatprep.subr.mxu0 0.0
        %1318 = vmatpush1.msra.mxu0 0.0
        %1319 = vmatprep.mubr.f32.mxu0 0.0
        %1320 = vmatmul.mubr.f32.gmra.mrb[0].mxu0 %v1253
        %v1321 = vpop.f32.mrb[0].mxu0
        %v1322 = vadd.f32 0.0, %v1321
        %v1323 = vpop.f32.mrb[0].mxu0
        %1324 = vdwg.mxu0
        %1325 = vrot.lane.b32.xlu0 %v986, 120
        %v1326 = vpop.permute.xlu0 %1325
        %1327 = vrot.lane.b32.xlu0 %v986, 104
        %v1328 = vpop.permute.xlu0 %1327
        %v1329 = vsel %vm999, %v1326, 0
        %v1331 = vsel %vm999, %v1328, 0
        %1333 = vmatprep.subr.mxu0 0.0
        %1334 = vmatpush1.xpose.msra.mxu0 %v1331
        %1335 = vmatprep.subr.mxu0 0.0
        %1336 = vmatpush1.xpose.msra.mxu0 0.0
        %1337 = vmatprep.subr.mxu0 0.0
        %1338 = vmatpush1.xpose.msra.mxu0 0.0
        %1339 = vmatprep.subr.mxu0 0.0
        %1340 = vmatpush1.xpose.msra.mxu0 0.0
        %1341 = vmatprep.subr.mxu0 0.0
        %1342 = vmatpush1.xpose.msra.mxu0 0.0
        %1343 = vmatprep.subr.mxu0 0.0
        %1344 = vmatpush1.xpose.msra.mxu0 0.0
        %1345 = vmatprep.subr.mxu0 0.0
        %1346 = vmatpush1.xpose.msra.mxu0 0.0
        %1347 = vmatprep.subr.mxu0 0.0
        %1348 = vmatpush1.xpose.msra.mxu0 0.0
        %1349 = vmatprep.subr.mxu0 0.0
        %1350 = vmatpush1.xpose.msra.mxu0 0.0
        %1351 = vmatprep.subr.mxu0 0.0
        %1352 = vmatpush1.xpose.msra.mxu0 0.0
        %1353 = vmatprep.subr.mxu0 0.0
        %1354 = vmatpush1.xpose.msra.mxu0 0.0
        %1355 = vmatprep.subr.mxu0 0.0
        %1356 = vmatpush1.xpose.msra.mxu0 0.0
        %1357 = vmatprep.subr.mxu0 0.0
        %1358 = vmatpush1.xpose.msra.mxu0 0.0
        %1359 = vmatprep.subr.mxu0 0.0
        %1360 = vmatpush1.xpose.msra.mxu0 0.0
        %1361 = vmatprep.subr.mxu0 0.0
        %1362 = vmatpush1.xpose.msra.mxu0 0.0
        %1363 = vmatprep.subr.mxu0 0.0
        %1364 = vmatpush1.xpose.msra.mxu0 0.0
        %1365 = vmatprep.subr.mxu0 0.0
        %1366 = vmatpush1.xpose.msra.mxu0 0.0
        %1367 = vmatprep.subr.mxu0 0.0
        %1368 = vmatpush1.xpose.msra.mxu0 0.0
        %1369 = vmatprep.subr.mxu0 0.0
        %1370 = vmatpush1.xpose.msra.mxu0 0.0
        %1371 = vmatprep.subr.mxu0 0.0
        %1372 = vmatpush1.xpose.msra.mxu0 0.0
        %1373 = vmatprep.subr.mxu0 0.0
        %1374 = vmatpush1.xpose.msra.mxu0 0.0
        %1375 = vmatprep.subr.mxu0 0.0
        %1376 = vmatpush1.xpose.msra.mxu0 0.0
        %1377 = vmatprep.subr.mxu0 0.0
        %1378 = vmatpush1.xpose.msra.mxu0 0.0
        %1379 = vmatprep.subr.mxu0 0.0
        %1380 = vmatpush1.xpose.msra.mxu0 0.0
        %1381 = vmatprep.subr.mxu0 0.0
        %1382 = vmatpush1.xpose.msra.mxu0 0.0
        %1383 = vmatprep.subr.mxu0 0.0
        %1384 = vmatpush1.xpose.msra.mxu0 0.0
        %1385 = vmatprep.subr.mxu0 0.0
        %1386 = vmatpush1.xpose.msra.mxu0 0.0
        %1387 = vmatprep.subr.mxu0 0.0
        %1388 = vmatpush1.xpose.msra.mxu0 0.0
        %1389 = vmatprep.subr.mxu0 0.0
        %1390 = vmatpush1.xpose.msra.mxu0 0.0
        %1391 = vmatprep.subr.mxu0 0.0
        %1392 = vmatpush1.xpose.msra.mxu0 0.0
        %1393 = vmatprep.subr.mxu0 0.0
        %1394 = vmatpush1.xpose.msra.mxu0 0.0
        %1395 = vmatprep.subr.mxu0 0.0
        %1396 = vmatpush1.xpose.msra.mxu0 0.0
        %1397 = vmatprep.mubr.f32.mxu0 0.0
        %1398 = vmatmul.mubr.f32.gmra.mrb[0].mxu0 %v1329
        %v1399 = vpop.f32.mrb[0].mxu0
        %v1400 = vadd.f32 %v995, %v1399
        %v1401 = vpop.f32.mrb[0].mxu0
        %1402 = vdwg.mxu0
        %1403 = vrot.lane.b32.xlu0 %v989, 120
        %v1404 = vpop.permute.xlu0 %1403
        %1405 = vrot.lane.b32.xlu0 %v989, 104
        %v1406 = vpop.permute.xlu0 %1405
        %v1407 = vsel %vm999, %v1404, 0
        %v1409 = vsel %vm999, %v1406, 0
        %1411 = vmatprep.subr.mxu0 0.0
        %1412 = vmatpush1.xpose.msra.mxu0 %v1409
        %1413 = vmatprep.subr.mxu0 0.0
        %1414 = vmatpush1.xpose.msra.mxu0 0.0
        %1415 = vmatprep.subr.mxu0 0.0
        %1416 = vmatpush1.xpose.msra.mxu0 0.0
        %1417 = vmatprep.subr.mxu0 0.0
        %1418 = vmatpush1.xpose.msra.mxu0 0.0
        %1419 = vmatprep.subr.mxu0 0.0
        %1420 = vmatpush1.xpose.msra.mxu0 0.0
        %1421 = vmatprep.subr.mxu0 0.0
        %1422 = vmatpush1.xpose.msra.mxu0 0.0
        %1423 = vmatprep.subr.mxu0 0.0
        %1424 = vmatpush1.xpose.msra.mxu0 0.0
        %1425 = vmatprep.subr.mxu0 0.0
        %1426 = vmatpush1.xpose.msra.mxu0 0.0
        %1427 = vmatprep.subr.mxu0 0.0
        %1428 = vmatpush1.xpose.msra.mxu0 0.0
        %1429 = vmatprep.subr.mxu0 0.0
        %1430 = vmatpush1.xpose.msra.mxu0 0.0
        %1431 = vmatprep.subr.mxu0 0.0
        %1432 = vmatpush1.xpose.msra.mxu0 0.0
        %1433 = vmatprep.subr.mxu0 0.0
        %1434 = vmatpush1.xpose.msra.mxu0 0.0
        %1435 = vmatprep.subr.mxu0 0.0
        %1436 = vmatpush1.xpose.msra.mxu0 0.0
        %1437 = vmatprep.subr.mxu0 0.0
        %1438 = vmatpush1.xpose.msra.mxu0 0.0
        %1439 = vmatprep.subr.mxu0 0.0
        %1440 = vmatpush1.xpose.msra.mxu0 0.0
        %1441 = vmatprep.subr.mxu0 0.0
        %1442 = vmatpush1.xpose.msra.mxu0 0.0
        %1443 = vmatprep.subr.mxu0 0.0
        %1444 = vmatpush1.xpose.msra.mxu0 0.0
        %1445 = vmatprep.subr.mxu0 0.0
        %1446 = vmatpush1.xpose.msra.mxu0 0.0
        %1447 = vmatprep.subr.mxu0 0.0
        %1448 = vmatpush1.xpose.msra.mxu0 0.0
        %1449 = vmatprep.subr.mxu0 0.0
        %1450 = vmatpush1.xpose.msra.mxu0 0.0
        %1451 = vmatprep.subr.mxu0 0.0
        %1452 = vmatpush1.xpose.msra.mxu0 0.0
        %1453 = vmatprep.subr.mxu0 0.0
        %1454 = vmatpush1.xpose.msra.mxu0 0.0
        %1455 = vmatprep.subr.mxu0 0.0
        %1456 = vmatpush1.xpose.msra.mxu0 0.0
        %1457 = vmatprep.subr.mxu0 0.0
        %1458 = vmatpush1.xpose.msra.mxu0 0.0
        %1459 = vmatprep.subr.mxu0 0.0
        %1460 = vmatpush1.xpose.msra.mxu0 0.0
        %1461 = vmatprep.subr.mxu0 0.0
        %1462 = vmatpush1.xpose.msra.mxu0 0.0
        %1463 = vmatprep.subr.mxu0 0.0
        %1464 = vmatpush1.xpose.msra.mxu0 0.0
        %1465 = vmatprep.subr.mxu0 0.0
        %1466 = vmatpush1.xpose.msra.mxu0 0.0
        %1467 = vmatprep.subr.mxu0 0.0
        %1468 = vmatpush1.xpose.msra.mxu0 0.0
        %1469 = vmatprep.subr.mxu0 0.0
        %1470 = vmatpush1.xpose.msra.mxu0 0.0
        %1471 = vmatprep.subr.mxu0 0.0
        %1472 = vmatpush1.xpose.msra.mxu0 0.0
        %1473 = vmatprep.subr.mxu0 0.0
        %1474 = vmatpush1.xpose.msra.mxu0 0.0
        %1475 = vmatprep.mubr.f32.mxu0 0.0
        %1476 = vmatmul.mubr.f32.gmra.mrb[0].mxu0 %v1407
        %v1477 = vpop.f32.mrb[0].mxu0
        %v1478 = vadd.f32 %v995, %v1477
        %v1479 = vpop.f32.mrb[0].mxu0
        %1480 = vdwg.mxu0
        %v1481 = vsel %vm999, %v1400, -inf
        %1482 = vmax.xlane.f32.xlu0 %v1481
        %v1483 = vpop.xlane.xlu0 %1482
        %v1484 = vsel %vm999, %v1478, -inf
        %1485 = vmax.xlane.f32.xlu0 %v1484
        %v1486 = vpop.xlane.xlu0 %1485
        %v1487 = vsub.f32 %v1400, %v1483
        %v1488 = vsub.f32 %v1478, %v1486
        %v1489 = vmul.f32 %v1487, 1.442695
        %v1490 = vpow.pop %v1489
        %v1491 = vmul.f32 %v1488, 1.442695
        %v1492 = vpow.pop %v1491
        %v1493 = vsel %vm999, %v1490, 0.0
        %1494 = vadd.xlane.f32.xlu0 %v1493
        %v1495 = vpop.xlane.xlu0 %1494
        %v1496 = vsel %vm999, %v1492, 0.0
        %1497 = vadd.xlane.f32.xlu0 %v1496
        %v1498 = vpop.xlane.xlu0 %1497
        %v1499 = vrcp.pop %v1495
        %v1500 = vrcp.pop %v1498
        %v1501 = vmul.f32 %v1490, %v1499
        %v1502 = vmul.f32 %v1492, %v1500
        %1503 = vrot.lane.b32.xlu0 %v986, 88
        %v1504 = vpop.permute.xlu0 %1503
        %v1507 = vsel %vm999, %v1501, 0
        %1509 = vmatprep.subr.mxu0 0.0
        %1510 = vmatpush1.msra.mxu0 %v1504
        %1511 = vmatprep.subr.mxu0 0.0
        %1512 = vmatpush1.msra.mxu0 0.0
        %1513 = vmatprep.subr.mxu0 0.0
        %1514 = vmatpush1.msra.mxu0 0.0
        %1515 = vmatprep.subr.mxu0 0.0
        %1516 = vmatpush1.msra.mxu0 0.0
        %1517 = vmatprep.subr.mxu0 0.0
        %1518 = vmatpush1.msra.mxu0 0.0
        %1519 = vmatprep.subr.mxu0 0.0
        %1520 = vmatpush1.msra.mxu0 0.0
        %1521 = vmatprep.subr.mxu0 0.0
        %1522 = vmatpush1.msra.mxu0 0.0
        %1523 = vmatprep.subr.mxu0 0.0
        %1524 = vmatpush1.msra.mxu0 0.0
        %1525 = vmatprep.subr.mxu0 0.0
        %1526 = vmatpush1.msra.mxu0 0.0
        %1527 = vmatprep.subr.mxu0 0.0
        %1528 = vmatpush1.msra.mxu0 0.0
        %1529 = vmatprep.subr.mxu0 0.0
        %1530 = vmatpush1.msra.mxu0 0.0
        %1531 = vmatprep.subr.mxu0 0.0
        %1532 = vmatpush1.msra.mxu0 0.0
        %1533 = vmatprep.subr.mxu0 0.0
        %1534 = vmatpush1.msra.mxu0 0.0
        %1535 = vmatprep.subr.mxu0 0.0
        %1536 = vmatpush1.msra.mxu0 0.0
        %1537 = vmatprep.subr.mxu0 0.0
        %1538 = vmatpush1.msra.mxu0 0.0
        %1539 = vmatprep.subr.mxu0 0.0
        %1540 = vmatpush1.msra.mxu0 0.0
        %1541 = vmatprep.subr.mxu0 0.0
        %1542 = vmatpush1.msra.mxu0 0.0
        %1543 = vmatprep.subr.mxu0 0.0
        %1544 = vmatpush1.msra.mxu0 0.0
        %1545 = vmatprep.subr.mxu0 0.0
        %1546 = vmatpush1.msra.mxu0 0.0
        %1547 = vmatprep.subr.mxu0 0.0
        %1548 = vmatpush1.msra.mxu0 0.0
        %1549 = vmatprep.subr.mxu0 0.0
        %1550 = vmatpush1.msra.mxu0 0.0
        %1551 = vmatprep.subr.mxu0 0.0
        %1552 = vmatpush1.msra.mxu0 0.0
        %1553 = vmatprep.subr.mxu0 0.0
        %1554 = vmatpush1.msra.mxu0 0.0
        %1555 = vmatprep.subr.mxu0 0.0
        %1556 = vmatpush1.msra.mxu0 0.0
        %1557 = vmatprep.subr.mxu0 0.0
        %1558 = vmatpush1.msra.mxu0 0.0
        %1559 = vmatprep.subr.mxu0 0.0
        %1560 = vmatpush1.msra.mxu0 0.0
        %1561 = vmatprep.subr.mxu0 0.0
        %1562 = vmatpush1.msra.mxu0 0.0
        %1563 = vmatprep.subr.mxu0 0.0
        %1564 = vmatpush1.msra.mxu0 0.0
        %1565 = vmatprep.subr.mxu0 0.0
        %1566 = vmatpush1.msra.mxu0 0.0
        %1567 = vmatprep.subr.mxu0 0.0
        %1568 = vmatpush1.msra.mxu0 0.0
        %1569 = vmatprep.subr.mxu0 0.0
        %1570 = vmatpush1.msra.mxu0 0.0
        %1571 = vmatprep.subr.mxu0 0.0
        %1572 = vmatpush1.msra.mxu0 0.0
        %1573 = vmatprep.mubr.f32.mxu0 0.0
        %1574 = vmatmul.mubr.f32.gmra.mrb[0].mxu0 %v1507
        %v1575 = vpop.f32.mrb[0].mxu0
        %v1576 = vadd.f32 0.0, %v1575
        %v1577 = vpop.f32.mrb[0].mxu0
        %1578 = vdwg.mxu0
        %1579 = vrot.lane.b32.xlu0 %v989, 88
        %v1580 = vpop.permute.xlu0 %1579
        %v1583 = vsel %vm999, %v1502, 0
        %1585 = vmatprep.subr.mxu0 0.0
        %1586 = vmatpush1.msra.mxu0 %v1580
        %1587 = vmatprep.subr.mxu0 0.0
        %1588 = vmatpush1.msra.mxu0 0.0
        %1589 = vmatprep.subr.mxu0 0.0
        %1590 = vmatpush1.msra.mxu0 0.0
        %1591 = vmatprep.subr.mxu0 0.0
        %1592 = vmatpush1.msra.mxu0 0.0
        %1593 = vmatprep.subr.mxu0 0.0
        %1594 = vmatpush1.msra.mxu0 0.0
        %1595 = vmatprep.subr.mxu0 0.0
        %1596 = vmatpush1.msra.mxu0 0.0
        %1597 = vmatprep.subr.mxu0 0.0
        %1598 = vmatpush1.msra.mxu0 0.0
        %1599 = vmatprep.subr.mxu0 0.0
        %1600 = vmatpush1.msra.mxu0 0.0
        %1601 = vmatprep.subr.mxu0 0.0
        %1602 = vmatpush1.msra.mxu0 0.0
        %1603 = vmatprep.subr.mxu0 0.0
        %1604 = vmatpush1.msra.mxu0 0.0
        %1605 = vmatprep.subr.mxu0 0.0
        %1606 = vmatpush1.msra.mxu0 0.0
        %1607 = vmatprep.subr.mxu0 0.0
        %1608 = vmatpush1.msra.mxu0 0.0
        %1609 = vmatprep.subr.mxu0 0.0
        %1610 = vmatpush1.msra.mxu0 0.0
        %1611 = vmatprep.subr.mxu0 0.0
        %1612 = vmatpush1.msra.mxu0 0.0
        %1613 = vmatprep.subr.mxu0 0.0
        %1614 = vmatpush1.msra.mxu0 0.0
        %1615 = vmatprep.subr.mxu0 0.0
        %1616 = vmatpush1.msra.mxu0 0.0
        %1617 = vmatprep.subr.mxu0 0.0
        %1618 = vmatpush1.msra.mxu0 0.0
        %1619 = vmatprep.subr.mxu0 0.0
        %1620 = vmatpush1.msra.mxu0 0.0
        %1621 = vmatprep.subr.mxu0 0.0
        %1622 = vmatpush1.msra.mxu0 0.0
        %1623 = vmatprep.subr.mxu0 0.0
        %1624 = vmatpush1.msra.mxu0 0.0
        %1625 = vmatprep.subr.mxu0 0.0
        %1626 = vmatpush1.msra.mxu0 0.0
        %1627 = vmatprep.subr.mxu0 0.0
        %1628 = vmatpush1.msra.mxu0 0.0
        %1629 = vmatprep.subr.mxu0 0.0
        %1630 = vmatpush1.msra.mxu0 0.0
        %1631 = vmatprep.subr.mxu0 0.0
        %1632 = vmatpush1.msra.mxu0 0.0
        %1633 = vmatprep.subr.mxu0 0.0
        %1634 = vmatpush1.msra.mxu0 0.0
        %1635 = vmatprep.subr.mxu0 0.0
        %1636 = vmatpush1.msra.mxu0 0.0
        %1637 = vmatprep.subr.mxu0 0.0
        %1638 = vmatpush1.msra.mxu0 0.0
        %1639 = vmatprep.subr.mxu0 0.0
        %1640 = vmatpush1.msra.mxu0 0.0
        %1641 = vmatprep.subr.mxu0 0.0
        %1642 = vmatpush1.msra.mxu0 0.0
        %1643 = vmatprep.subr.mxu0 0.0
        %1644 = vmatpush1.msra.mxu0 0.0
        %1645 = vmatprep.subr.mxu0 0.0
        %1646 = vmatpush1.msra.mxu0 0.0
        %1647 = vmatprep.subr.mxu0 0.0
        %1648 = vmatpush1.msra.mxu0 0.0
        %1649 = vmatprep.mubr.f32.mxu0 0.0
        %1650 = vmatmul.mubr.f32.gmra.mrb[0].mxu0 %v1583
        %v1651 = vpop.f32.mrb[0].mxu0
        %v1652 = vadd.f32 0.0, %v1651
        %v1653 = vpop.f32.mrb[0].mxu0
        %1654 = vdwg.mxu0
        %1657 = vrot.lane.b32.xlu0 %v1576, 8
        %v1658 = vpop.permute.xlu0 %1657
        %1659 = vrot.lane.b32.xlu0 %v1652, 8
        %v1660 = vpop.permute.xlu0 %1659
        %v1663 = vsel %vm999, %v1246, %v1658
        %v1664 = vsel %vm999, %v1322, %v1660
        %v1665 = vpack.c.bf16 %v1664, %v1663
        %v1666 = vld [vmem:[%s677] sm:$0xf]
        %v1667 = vld [vmem:[%s677 + $0x4] sm:$0xf]
        %v1668 = vld [vmem:[%s680] sm:$0x1]
        %v1670 = vlaneseq
        %v1671 = vshrl.u32 %v1670, 7
        %v1672 = vsub.s32 0, %v1671
        %v1673 = vrot.slane %v1668, %v1672
        %v1677 = vunpack.c.l.b16 %v1666
        %v1678 = vunpack.c.l.b16 %v1667
        %v1679 = vpack.c.b16 %v1678, %v1677
        %vm1681 = vcmask 130048
        %v1683 = vsel %vm1681, %v1665, 0
        %1685 = vmatprep.subr.bf16.mxu0 0
        %1686 = vmatpush1.bf16.msra.mxu0 %v1679
        %1687 = vmatprep.subr.bf16.mxu0 0
        %1688 = vmatpush1.bf16.msra.mxu0 0
        %1689 = vmatprep.subr.bf16.mxu0 0
        %1690 = vmatpush1.bf16.msra.mxu0 0
        %1691 = vmatprep.subr.bf16.mxu0 0
        %1692 = vmatpush1.bf16.msra.mxu0 0
        %1693 = vmatprep.subr.bf16.mxu0 0
        %1694 = vmatpush1.bf16.msra.mxu0 0
        %1695 = vmatprep.subr.bf16.mxu0 0
        %1696 = vmatpush1.bf16.msra.mxu0 0
        %1697 = vmatprep.subr.bf16.mxu0 0
        %1698 = vmatpush1.bf16.msra.mxu0 0
        %1699 = vmatprep.subr.bf16.mxu0 0
        %1700 = vmatpush1.bf16.msra.mxu0 0
        %1701 = vmatprep.subr.bf16.mxu0 0
        %1702 = vmatpush1.bf16.msra.mxu0 0
        %1703 = vmatprep.subr.bf16.mxu0 0
        %1704 = vmatpush1.bf16.msra.mxu0 0
        %1705 = vmatprep.subr.bf16.mxu0 0
        %1706 = vmatpush1.bf16.msra.mxu0 0
        %1707 = vmatprep.subr.bf16.mxu0 0
        %1708 = vmatpush1.bf16.msra.mxu0 0
        %1709 = vmatprep.subr.bf16.mxu0 0
        %1710 = vmatpush1.bf16.msra.mxu0 0
        %1711 = vmatprep.subr.bf16.mxu0 0
        %1712 = vmatpush1.bf16.msra.mxu0 0
        %1713 = vmatprep.subr.bf16.mxu0 0
        %1714 = vmatpush1.bf16.msra.mxu0 0
        %1715 = vmatprep.subr.bf16.mxu0 0
        %1716 = vmatpush1.bf16.msra.mxu0 0
        %1717 = vmatprep.mubr.bf16.mxu0 0
        %1718 = vmatmul.mubr.bf16.gmra.mrb[0].mxu0 %v1683
        %v1719 = vpop.f32.mrb[0].mxu0
        %v1720 = vadd.f32 %v1673, %v1719
        %v1721 = vpop.f32.mrb[0].mxu0
        %v1722 = vpop.f32.mrb[0].mxu0
        %v1723 = vadd.f32 %v1673, %v1722
        %v1724 = vpop.f32.mrb[0].mxu0
        %1725 = vdwg.mxu0
        %v1726 = vadd.f32 %v883, %v1720
        %v1727 = vadd.f32 %v884, %v1723
        %v1728 = vld [vmem:[%s683] sm:$0x1]
        %v1729 = vld [vmem:[%s686] sm:$0x1]
        %v1730 = vsel %vm887, %v1726, 0.0
        %1731 = vadd.xlane.f32.xlu0 %v1730
        %v1732 = vpop.xlane.xlu0 %1731
        %v1733 = vsel %vm887, %v1727, 0.0
        %1734 = vadd.xlane.f32.xlu0 %v1733
        %v1735 = vpop.xlane.xlu0 %1734
        %v1736 = vmul.f32 %v1732, %v894
        %v1737 = vmul.f32 %v1735, %v894
        %v1738 = vsub.f32 %v1726, %v1736
        %v1739 = vsub.f32 %v1727, %v1737
        %v1740 = vmul.f32 %v1738, %v1738
        %v1741 = vmul.f32 %v1739, %v1739
        %v1742 = vsel %vm887, %v1740, 0.0
        %1743 = vadd.xlane.f32.xlu0 %v1742
        %v1744 = vpop.xlane.xlu0 %1743
        %v1745 = vsel %vm887, %v1741, 0.0
        %1746 = vadd.xlane.f32.xlu0 %v1745
        %v1747 = vpop.xlane.xlu0 %1746
        %v1748 = vmul.f32 %v1744, %v894
        %v1749 = vmul.f32 %v1747, %v894
        %v1750 = vadd.f32 %v1748, 1e-05
        %v1751 = vadd.f32 %v1749, 1e-05
        %v1752 = vrsqrt.pop %v1750
        %v1753 = vrsqrt.pop %v1751
        %v1754 = vmul.f32 %v1738, %v1752
        %v1755 = vmul.f32 %v1739, %v1753
        %v1757 = vlaneseq
        %v1758 = vshrl.u32 %v1757, 7
        %v1759 = vsub.s32 0, %v1758
        %v1760 = vrot.slane %v1728, %v1759
        %v1762 = vmul.f32 %v1754, %v1760
        %v1763 = vmul.f32 %v1755, %v1760
        %v1765 = vlaneseq
        %v1766 = vshrl.u32 %v1765, 7
        %v1767 = vsub.s32 0, %v1766
        %v1768 = vrot.slane %v1729, %v1767
        %v1770 = vadd.f32 %v1762, %v1768
        %v1771 = vadd.f32 %v1763, %v1768
        %v1772 = vpack.c.bf16 %v1771, %v1770
        %v1773 = vld [vmem:[%s691] sm:$0xf]
        %v1774 = vld [vmem:[%s691 + $0x4] sm:$0xf]
        %v1775 = vld [vmem:[%s691 + $0x8] sm:$0xf]
        %v1776 = vld [vmem:[%s691 + $0xc] sm:$0xf]
        %v1777 = vld [vmem:[%s694] sm:$0x1]
        %v1779 = vlaneseq
        %v1780 = vshrl.u32 %v1779, 7
        %v1781 = vsub.s32 0, %v1780
        %v1782 = vrot.slane %v1777, %v1781
        %v1788 = vunpack.c.l.b16 %v1773
        %v1789 = vunpack.c.l.b16 %v1774
        %v1790 = vunpack.c.l.b16 %v1775
        %v1791 = vunpack.c.l.b16 %v1776
        %v1792 = vpack.c.b16 %v1789, %v1788
        %v1793 = vpack.c.b16 %v1791, %v1790
        %v1797 = vsel %vm887, %v1772, 0
        %1799 = vmatprep.subr.bf16.mxu0 0
        %1800 = vmatpush1.bf16.msra.mxu0 %v1792
        %1801 = vmatprep.subr.bf16.mxu0 0
        %1802 = vmatpush1.bf16.msra.mxu0 %v1793
        %1803 = vmatprep.subr.bf16.mxu0 0
        %1804 = vmatpush1.bf16.msra.mxu0 0
        %1805 = vmatprep.subr.bf16.mxu0 0
        %1806 = vmatpush1.bf16.msra.mxu0 0
        %1807 = vmatprep.subr.bf16.mxu0 0
        %1808 = vmatpush1.bf16.msra.mxu0 0
        %1809 = vmatprep.subr.bf16.mxu0 0
        %1810 = vmatpush1.bf16.msra.mxu0 0
        %1811 = vmatprep.subr.bf16.mxu0 0
        %1812 = vmatpush1.bf16.msra.mxu0 0
        %1813 = vmatprep.subr.bf16.mxu0 0
        %1814 = vmatpush1.bf16.msra.mxu0 0
        %1815 = vmatprep.subr.bf16.mxu0 0
        %1816 = vmatpush1.bf16.msra.mxu0 0
        %1817 = vmatprep.subr.bf16.mxu0 0
        %1818 = vmatpush1.bf16.msra.mxu0 0
        %1819 = vmatprep.subr.bf16.mxu0 0
        %1820 = vmatpush1.bf16.msra.mxu0 0
        %1821 = vmatprep.subr.bf16.mxu0 0
        %1822 = vmatpush1.bf16.msra.mxu0 0
        %1823 = vmatprep.subr.bf16.mxu0 0
        %1824 = vmatpush1.bf16.msra.mxu0 0
        %1825 = vmatprep.subr.bf16.mxu0 0
        %1826 = vmatpush1.bf16.msra.mxu0 0
        %1827 = vmatprep.subr.bf16.mxu0 0
        %1828 = vmatpush1.bf16.msra.mxu0 0
        %1829 = vmatprep.subr.bf16.mxu0 0
        %1830 = vmatpush1.bf16.msra.mxu0 0
        %1831 = vmatprep.mubr.bf16.mxu0 0
        %1832 = vmatmul.mubr.bf16.gmra.mrb[0].mxu0 %v1797
        %v1833 = vpop.f32.mrb[0].mxu0
        %v1834 = vadd.f32 %v1782, %v1833
        %v1835 = vpop.f32.mrb[0].mxu0
        %v1836 = vpop.f32.mrb[0].mxu0
        %v1837 = vadd.f32 %v1782, %v1836
        %v1838 = vpop.f32.mrb[0].mxu0
        %1839 = vdwg.mxu0
        %v1840 = vmul.f32 %v1834, 0.5
        %v1841 = vmul.f32 %v1837, 0.5
        %v1842 = vmul.f32 %v1834, 0.70710677
        %v1843 = vmul.f32 %v1837, 0.70710677
        %v1844 = verf.f32.pop %v1842
        %v1845 = verf.f32.pop %v1843
        %v1846 = vadd.f32 %v1844, 1.0
        %v1847 = vadd.f32 %v1845, 1.0
        %v1848 = vmul.f32 %v1840, %v1846
        %v1849 = vmul.f32 %v1841, %v1847
        %v1850 = vpack.c.bf16 %v1849, %v1848
        %v1851 = vld [vmem:[%s699] sm:$0xf]
        %v1852 = vld [vmem:[%s699 + $0x4] sm:$0xf]
        %v1853 = vld [vmem:[%s699 + $0x8] sm:$0xf]
        %v1854 = vld [vmem:[%s699 + $0xc] sm:$0xf]
        %v1855 = vld [vmem:[%s699 + $0x10] sm:$0xf]
        %v1856 = vld [vmem:[%s699 + $0x14] sm:$0xf]
        %v1857 = vld [vmem:[%s699 + $0x18] sm:$0xf]
        %v1858 = vld [vmem:[%s699 + $0x1c] sm:$0xf]
        %v1859 = vld [vmem:[%s702] sm:$0x1]
        %v1861 = vlaneseq
        %v1862 = vshrl.u32 %v1861, 7
        %v1863 = vsub.s32 0, %v1862
        %v1864 = vrot.slane %v1859, %v1863
        %v1874 = vunpack.c.l.b16 %v1851
        %v1875 = vunpack.c.l.b16 %v1852
        %v1876 = vunpack.c.l.b16 %v1853
        %v1877 = vunpack.c.l.b16 %v1854
        %v1878 = vunpack.c.l.b16 %v1855
        %v1879 = vunpack.c.l.b16 %v1856
        %v1880 = vunpack.c.l.b16 %v1857
        %v1881 = vunpack.c.l.b16 %v1858
        %v1882 = vpack.c.b16 %v1875, %v1874
        %v1883 = vpack.c.b16 %v1877, %v1876
        %v1884 = vpack.c.b16 %v1879, %v1878
        %v1885 = vpack.c.b16 %v1881, %v1880
        %vm1890 = vcmask 523264
        %v1892 = vsel %vm1890, %v1850, 0
        %1894 = vmatprep.subr.bf16.mxu0 0
        %1895 = vmatpush1.bf16.msra.mxu0 %v1882
        %1896 = vmatprep.subr.bf16.mxu0 0
        %1897 = vmatpush1.bf16.msra.mxu0 %v1883
        %1898 = vmatprep.subr.bf16.mxu0 0
        %1899 = vmatpush1.bf16.msra.mxu0 %v1884
        %1900 = vmatprep.subr.bf16.mxu0 0
        %1901 = vmatpush1.bf16.msra.mxu0 %v1885
        %1902 = vmatprep.subr.bf16.mxu0 0
        %1903 = vmatpush1.bf16.msra.mxu0 0
        %1904 = vmatprep.subr.bf16.mxu0 0
        %1905 = vmatpush1.bf16.msra.mxu0 0
        %1906 = vmatprep.subr.bf16.mxu0 0
        %1907 = vmatpush1.bf16.msra.mxu0 0
        %1908 = vmatprep.subr.bf16.mxu0 0
        %1909 = vmatpush1.bf16.msra.mxu0 0
        %1910 = vmatprep.subr.bf16.mxu0 0
        %1911 = vmatpush1.bf16.msra.mxu0 0
        %1912 = vmatprep.subr.bf16.mxu0 0
        %1913 = vmatpush1.bf16.msra.mxu0 0
        %1914 = vmatprep.subr.bf16.mxu0 0
        %1915 = vmatpush1.bf16.msra.mxu0 0
        %1916 = vmatprep.subr.bf16.mxu0 0
        %1917 = vmatpush1.bf16.msra.mxu0 0
        %1918 = vmatprep.subr.bf16.mxu0 0
        %1919 = vmatpush1.bf16.msra.mxu0 0
        %1920 = vmatprep.subr.bf16.mxu0 0
        %1921 = vmatpush1.bf16.msra.mxu0 0
        %1922 = vmatprep.subr.bf16.mxu0 0
        %1923 = vmatpush1.bf16.msra.mxu0 0
        %1924 = vmatprep.subr.bf16.mxu0 0
        %1925 = vmatpush1.bf16.msra.mxu0 0
        %1926 = vmatprep.mubr.bf16.mxu0 0
        %1927 = vmatmul.mubr.bf16.gmra.mrb[0].mxu0 %v1892
        %v1928 = vpop.f32.mrb[0].mxu0
        %v1929 = vadd.f32 %v1864, %v1928
        %v1930 = vpop.f32.mrb[0].mxu0
        %v1931 = vpop.f32.mrb[0].mxu0
        %v1932 = vadd.f32 %v1864, %v1931
        %v1933 = vpop.f32.mrb[0].mxu0
        %1934 = vdwg.mxu0
        %v1935 = vadd.f32 %v1726, %v1929
        %v1936 = vadd.f32 %v1727, %v1932
        %1937 = vst.msk [vmem:[#allocation2] sm:$0xff] %vm887, %v1935
        %1938 = vst.msk [vmem:[#allocation2 + $0x8] sm:$0xff] %vm887, %v1936
        %p1939 = scmp.eq.s32.totalorder %s33, 1
        // Predicated region
        $region89: #{tpu_custom_call.1} parent=83 // pred_check
          %p1940 = pneg %p1939
        $region90: #{tpu_custom_call.1} parent=83 // pred_check_branch
          %1942 = sbr.rel (%p1940) target = $region92
        $region91: #{tpu_custom_call.1} parent=83 // pred_region
          %vm1943 = vcmask 253952
          %1944 = vst.msk [vmem:[#allocation3] sm:$0x1] %vm1943, %v1935
          %1945 = vst.msk [vmem:[#allocation3 + $0x1] sm:$0x1] %vm1943, %v1936
        $region92: #{tpu_custom_call.1} parent=83 // pred_fallthru
          _
        // Predicated region
        $region93: #{tpu_custom_call.1} parent=83 // pred_check
          %p1946 = pneg %p454
        $region94: #{tpu_custom_call.1} parent=83 // pred_check_branch
          %1948 = sbr.rel (%p1946) target = $region96
        $region95: #{tpu_custom_call.1} parent=83 // pred_region
          %s1949 = smul.u32 2, %s32
          %s1951 = ssub.s32 32, 32
          %1952 = vsyncadd [#allocation4], %s1951
          %s1953 = smul.addr %s1949, 16
          %s1954 = scalar_lea.hbm %s16, %s1953
          %s1955 = sshll.u32 [#allocation3], 4
          %s1956 = int_to_ptr.vmem [resolvable:$true] %s1955
          %1961 = dma.vmem_to_hbm [thread:$0]  %s1956, 32, %s1954, [#allocation4], 16, 16, 1
        $region96: #{tpu_custom_call.1} parent=83 // pred_fallthru
          _
        // Predicated region
        $region97: #{tpu_custom_call.1} parent=83 // pred_check
          %p1962 = pneg %p454
        $region98: #{tpu_custom_call.1} parent=83 // pred_check_branch
          %1964 = sbr.rel (%p1962) target = $region100
        $region99: #{tpu_custom_call.1} parent=83 // pred_region
          %1965 = dma.done [#allocation4], 32
        $region100: #{tpu_custom_call.1} parent=83 // pred_fallthru
          _
      $region84: #{tpu_custom_call.1} parent=5 // pred_fallthru
        _
      %p1966 = scmp.le.s32.totalorder 2, %s23
      // Predicated region
      $region101: #{tpu_custom_call.1} parent=5 // pred_check
        %p1967 = pneg %p1966
      $region102: #{tpu_custom_call.1} parent=5 // pred_check_branch
        %1969 = sbr.rel (%p1967) target = $region104
      $region103: #{tpu_custom_call.1} parent=5 // pred_region
        %s1970 = ssub.s32 %s23, 2
      $region104: #{tpu_custom_call.1} parent=5 // pred_fallthru
        _
    $region6: #{tpu_custom_call.1} parent=1 // loop_footer
      %s27 = sadd.s32 1, %s23
    $region7: #{tpu_custom_call.1} parent=1 // loop_footer_branch
      %22 = sbr.rel target = $region3
    $region8: #{tpu_custom_call.1} parent=1 // loop_exit
      _
    %1971 = vsyncpa [#allocation4], 1
    %s1972 = scalar_lea.sflag [#allocation4], 1
    %1973 = vsyncpa %s1972, 1

</llo_original>
